<compile_context>
chip_gen: v7x
topology: tpu7x:2x2x1
jax: 0.10.0
libtpu: 0.0.40
codegen_flags: <defaults>
</compile_context>

<pallas_src>
import functools

import jax
import jax.numpy as jnp
from jax import lax
from jax.experimental import pallas as pl
from jax.experimental.pallas import tpu as pltpu


def _round_up(x, m):
    return (x + m - 1) // m * m


def _det_small(m):
    """Exact Laplace expansion of an n x n matrix given as a list-of-lists of
    (1, Bt) lane vectors. Intended for n <= 4."""
    n = len(m)
    if n == 1:
        return m[0][0]
    det = None
    sign = 1.0
    for c in range(n):
        minor = [[m[r][cc] for cc in range(n) if cc != c] for r in range(1, n)]
        term = m[0][c] * _det_small(minor)
        det = sign * term if det is None else det + sign * term
        sign = -sign
    return det


def _se_kernel(x_ref, se1_ref, se0_ref, *, nt, nr, bt, batch, scale):
    # x_ref: (4*nt*nr, bt) — rows a*nt*nr + r*nt + t, a in {hr, hi, h0r, h0i}.
    # Batch lives in the lane axis (bt lanes, multiple of 128).
    blk = nt * nr

    def grab(a, r):
        s = a * blk + r * nt
        return x_ref[s:s + nt, :]                    # (nt, bt) contiguous rows

    hr = [grab(0, r) for r in range(nr)]
    hi = [grab(1, r) for r in range(nr)]
    h0r = [grab(2, r) for r in range(nr)]
    h0i = [grab(3, r) for r in range(nr)]

    def fro_sq(re, im):
        acc = None
        for r in range(nr):
            t = jnp.sum(re[r] * re[r] + im[r] * im[r], axis=0, keepdims=True)
            acc = t if acc is None else acc + t
        return acc                                   # (1, bt)

    # ||H||_F^2 and ||H0||_F^2 per batch element (matmul0 = H0 @ I).
    fro_h_sq = fro_sq(hr, hi)
    fro0_sq = fro_sq(h0r, h0i)

    # Combined scalars:  |D@H0|^2 / noise_var = |H^H H0|^2 * s1,  s1 below.
    # noise_var = ||H0||_F^2 / (Nt*Nr) * 10^(-SNR/10)  -> scale = Nt*Nr*10^(SNR/10)
    s1 = scale / (fro0_sq * fro_h_sq)                # exact reciprocal via divide
    s2 = scale / (fro0_sq * fro0_sq)

    m1 = [[None] * nr for _ in range(nr)]
    m2 = [[None] * nr for _ in range(nr)]
    for i in range(nr):
        for j in range(nr):
            # (conj(H)^T @ H0)[i, j] and (conj(H0)^T @ H0)[i, j], unnormalized.
            p1r = jnp.sum(hr[i] * h0r[j] + hi[i] * h0i[j], axis=0, keepdims=True)
            p1i = jnp.sum(hr[i] * h0i[j] - hi[i] * h0r[j], axis=0, keepdims=True)
            p2r = jnp.sum(h0r[i] * h0r[j] + h0i[i] * h0i[j], axis=0, keepdims=True)
            p2i = jnp.sum(h0r[i] * h0i[j] - h0i[i] * h0r[j], axis=0, keepdims=True)
            d = 1.0 if i == j else 0.0
            m1[i][j] = (p1r * p1r + p1i * p1i) * s1 + d
            m2[i][j] = (p2r * p2r + p2i * p2i) * s2 + d

    det1 = _det_small(m1)                            # (1, bt)
    det2 = _det_small(m2)

    # Mask out lanes that are batch padding, then partial-sum -log2|det|.
    start = pl.program_id(0) * bt
    lane = lax.broadcasted_iota(jnp.int32, (1, bt), 1)
    valid = (start + lane) < batch
    nl1 = jnp.where(valid, -jnp.log2(jnp.abs(det1)), 0.0)
    nl2 = jnp.where(valid, -jnp.log2(jnp.abs(det2)), 0.0)
    part1 = jnp.sum(nl1)
    part2 = jnp.sum(nl2)

    # Lane-dense, unmasked (1, 8, 128) store of the broadcast partial sum.
    se1_ref[...] = jnp.zeros_like(se1_ref) + part1
    se0_ref[...] = jnp.zeros_like(se0_ref) + part2


def se_loss(h_r, h_i, h0_r, h0_i, snr=10, block_b=512):
    """Pallas implementation of SE_Loss.forward; returns (SE, SE0)."""
    B, Nt, Nr = h_r.shape
    if Nr > 4:
        # TODO(synk): in-kernel closed-form determinant is only implemented for
        # Nr <= 4; fall back to the pure-JAX path for larger Nr.
        return se_loss_ref(h_r, h_i, h0_r, h0_i, snr=snr)

    # Pack the four planes into one lane-dense slab: (4*Nr*Nt, B), batch in lanes.
    packed = jnp.stack([h_r, h_i, h0_r, h0_i], axis=0).astype(jnp.float32)  # (4,B,Nt,Nr)
    packed = jnp.transpose(packed, (0, 3, 2, 1))                            # (4,Nr,Nt,B)
    R = 4 * Nt * Nr
    packed = packed.reshape(R, B)

    bt = min(int(block_b), _round_up(B, 128))
    bt = _round_up(bt, 128)
    Bp = _round_up(B, bt)
    if Bp != B:
        packed = jnp.pad(packed, ((0, 0), (0, Bp - B)))
    nblocks = Bp // bt

    scale = float(Nt * Nr) * (10.0 ** (float(snr) / 10.0))
    kernel = functools.partial(_se_kernel, nt=Nt, nr=Nr, bt=bt, batch=B,
                               scale=scale)

    p1, p2 = pl.pallas_call(
        kernel,
        out_shape=(jax.ShapeDtypeStruct((nblocks, 8, 128), jnp.float32),
                   jax.ShapeDtypeStruct((nblocks, 8, 128), jnp.float32)),
        grid_spec=pltpu.PrefetchScalarGridSpec(
            num_scalar_prefetch=0,
            grid=(nblocks,),
            in_specs=[pl.BlockSpec((R, bt), lambda i: (0, i))],
            out_specs=[pl.BlockSpec((1, 8, 128), lambda i: (i, 0, 0)),
                       pl.BlockSpec((1, 8, 128), lambda i: (i, 0, 0))],
        ),
        compiler_params=pltpu.CompilerParams(
            dimension_semantics=("parallel",)),
    )(packed)

    se = jnp.sum(p1[:, 0, 0]) / B
    se0 = jnp.sum(p2[:, 0, 0]) / B
    return se, se0


def se_loss_ref(h_r, h_i, h0_r, h0_i, snr=10):
    """Pure-JAX reference mirroring the PyTorch forward (for a sanity check)."""
    h = h_r + 1j * h_i
    h0 = h0_r + 1j * h0_i
    B, Nt, Nr = h.shape
    S = jnp.broadcast_to(jnp.eye(Nr, dtype=jnp.float32), (B, Nr, Nr))
    fro = jnp.sqrt(jnp.sum(jnp.abs(h0) ** 2, axis=(1, 2)))
    noise_var = fro ** 2 / (Nt * Nr) * (10.0 ** (-snr / 10.0))
    D = jnp.conj(jnp.swapaxes(h, 1, 2))
    D = D / jnp.sqrt(jnp.sum(jnp.abs(D) ** 2, axis=(1, 2), keepdims=True))
    D0 = jnp.conj(jnp.swapaxes(h0, 1, 2))
    D0 = D0 / jnp.sqrt(jnp.sum(jnp.abs(D0) ** 2, axis=(1, 2), keepdims=True))
    m1 = D @ h0
    m2 = D0 @ h0
    nv = noise_var[:, None, None]
    se = -jnp.mean(jnp.log2(jnp.abs(jnp.linalg.det(jnp.abs(m1) ** 2 / nv + S))))
    se0 = -jnp.mean(jnp.log2(jnp.abs(jnp.linalg.det(jnp.abs(m2) ** 2 / nv + S))))
    return se, se0


if __name__ == "__main__":
    key = jax.random.PRNGKey(0)

    # Test 1: the module's natural small shape (single block, heavy lane masking).
    B, Nt, Nr = 2, 16, 4
    k1, k2, k3, k4, k5 = jax.random.split(key, 5)
    h_r = jax.random.normal(k1, (B, Nt, Nr), jnp.float32)
    h_i = jax.random.normal(k2, (B, Nt, Nr), jnp.float32)
    h0_r = jax.random.normal(k3, (B, Nt, Nr), jnp.float32)
    h0_i = jax.random.normal(k4, (B, Nt, Nr), jnp.float32)

    se, se0 = jax.block_until_ready(se_loss(h_r, h_i, h0_r, h0_i, snr=10))
    se_ref, se0_ref = jax.block_until_ready(se_loss_ref(h_r, h_i, h0_r, h0_i, snr=10))
    assert jnp.allclose(se, se_ref, rtol=1e-3, atol=1e-3), (se, se_ref)
    assert jnp.allclose(se0, se0_ref, rtol=1e-3, atol=1e-3), (se0, se0_ref)

    # Test 2: multi-block grid (B not a multiple of the block) exercises the
    # parallel grid axis, batch padding mask and partial-sum reduction.
    B2 = 200
    ks = jax.random.split(k5, 4)
    a_r = jax.random.normal(ks[0], (B2, Nt, Nr), jnp.float32)
    a_i = jax.random.normal(ks[1], (B2, Nt, Nr), jnp.float32)
    b_r = jax.random.normal(ks[2], (B2, Nt, Nr), jnp.float32)
    b_i = jax.random.normal(ks[3], (B2, Nt, Nr), jnp.float32)
    se2, se02 = jax.block_until_ready(se_loss(a_r, a_i, b_r, b_i, snr=10, block_b=128))
    se2_ref, se02_ref = jax.block_until_ready(se_loss_ref(a_r, a_i, b_r, b_i, snr=10))
    assert jnp.allclose(se2, se2_ref, rtol=1e-3, atol=1e-3), (se2, se2_ref)
    assert jnp.allclose(se02, se02_ref, rtol=1e-3, atol=1e-3), (se02, se02_ref)

    print("KERNEL_OK")
</pallas_src>

<mosaic_0001>
module attributes {stable_mosaic.version = 11 : i64} {
  func.func @_se_kernel(%arg0: i32, %arg1: memref<256x128xf32, #tpu.memory_space<vmem>>, %arg2: memref<1x8x128xf32, #tpu.memory_space<vmem>>, %arg3: memref<1x8x128xf32, #tpu.memory_space<vmem>>) attributes {dimension_semantics = [#tpu.dimension_semantics<parallel>], iteration_bounds = array<i64: 1>, scalar_prefetch = 0 : i64, scratch_operands = 0 : i64, tpu.core_type = #tpu.core_type<tc>, window_params = [{transform_indices = @transform_0, window_bounds = array<i64: 256, 128>}, {transform_indices = @transform_1, window_bounds = array<i64: 1, 8, 128>}, {transform_indices = @transform_2, window_bounds = array<i64: 1, 8, 128>}]} {
    %c0 = arith.constant 0 : index
    %c0_0 = arith.constant 0 : index
    %0 = vector.load %arg1[%c0, %c0_0] : memref<256x128xf32, #tpu.memory_space<vmem>>, vector<16x128xf32>
    %c16 = arith.constant 16 : index
    %c0_1 = arith.constant 0 : index
    %1 = vector.load %arg1[%c16, %c0_1] : memref<256x128xf32, #tpu.memory_space<vmem>>, vector<16x128xf32>
    %c32 = arith.constant 32 : index
    %c0_2 = arith.constant 0 : index
    %2 = vector.load %arg1[%c32, %c0_2] : memref<256x128xf32, #tpu.memory_space<vmem>>, vector<16x128xf32>
    %c48 = arith.constant 48 : index
    %c0_3 = arith.constant 0 : index
    %3 = vector.load %arg1[%c48, %c0_3] : memref<256x128xf32, #tpu.memory_space<vmem>>, vector<16x128xf32>
    %c64 = arith.constant 64 : index
    %c0_4 = arith.constant 0 : index
    %4 = vector.load %arg1[%c64, %c0_4] : memref<256x128xf32, #tpu.memory_space<vmem>>, vector<16x128xf32>
    %c80 = arith.constant 80 : index
    %c0_5 = arith.constant 0 : index
    %5 = vector.load %arg1[%c80, %c0_5] : memref<256x128xf32, #tpu.memory_space<vmem>>, vector<16x128xf32>
    %c96 = arith.constant 96 : index
    %c0_6 = arith.constant 0 : index
    %6 = vector.load %arg1[%c96, %c0_6] : memref<256x128xf32, #tpu.memory_space<vmem>>, vector<16x128xf32>
    %c112 = arith.constant 112 : index
    %c0_7 = arith.constant 0 : index
    %7 = vector.load %arg1[%c112, %c0_7] : memref<256x128xf32, #tpu.memory_space<vmem>>, vector<16x128xf32>
    %c128 = arith.constant 128 : index
    %c0_8 = arith.constant 0 : index
    %8 = vector.load %arg1[%c128, %c0_8] : memref<256x128xf32, #tpu.memory_space<vmem>>, vector<16x128xf32>
    %c144 = arith.constant 144 : index
    %c0_9 = arith.constant 0 : index
    %9 = vector.load %arg1[%c144, %c0_9] : memref<256x128xf32, #tpu.memory_space<vmem>>, vector<16x128xf32>
    %c160 = arith.constant 160 : index
    %c0_10 = arith.constant 0 : index
    %10 = vector.load %arg1[%c160, %c0_10] : memref<256x128xf32, #tpu.memory_space<vmem>>, vector<16x128xf32>
    %c176 = arith.constant 176 : index
    %c0_11 = arith.constant 0 : index
    %11 = vector.load %arg1[%c176, %c0_11] : memref<256x128xf32, #tpu.memory_space<vmem>>, vector<16x128xf32>
    %c192 = arith.constant 192 : index
    %c0_12 = arith.constant 0 : index
    %12 = vector.load %arg1[%c192, %c0_12] : memref<256x128xf32, #tpu.memory_space<vmem>>, vector<16x128xf32>
    %c208 = arith.constant 208 : index
    %c0_13 = arith.constant 0 : index
    %13 = vector.load %arg1[%c208, %c0_13] : memref<256x128xf32, #tpu.memory_space<vmem>>, vector<16x128xf32>
    %c224 = arith.constant 224 : index
    %c0_14 = arith.constant 0 : index
    %14 = vector.load %arg1[%c224, %c0_14] : memref<256x128xf32, #tpu.memory_space<vmem>>, vector<16x128xf32>
    %c240 = arith.constant 240 : index
    %c0_15 = arith.constant 0 : index
    %15 = vector.load %arg1[%c240, %c0_15] : memref<256x128xf32, #tpu.memory_space<vmem>>, vector<16x128xf32>
    %16 = arith.mulf %0, %0 : vector<16x128xf32>
    %17 = arith.mulf %4, %4 : vector<16x128xf32>
    %18 = arith.addf %16, %17 : vector<16x128xf32>
    %cst = arith.constant dense<0.000000e+00> : vector<128xf32>
    %19 = vector.multi_reduction <add>, %18, %cst [0] : vector<16x128xf32> to vector<128xf32>
    %20 = vector.shape_cast %19 : vector<128xf32> to vector<1x128xf32>
    %21 = arith.mulf %1, %1 : vector<16x128xf32>
    %22 = arith.mulf %5, %5 : vector<16x128xf32>
    %23 = arith.addf %21, %22 : vector<16x128xf32>
    %cst_16 = arith.constant dense<0.000000e+00> : vector<128xf32>
    %24 = vector.multi_reduction <add>, %23, %cst_16 [0] : vector<16x128xf32> to vector<128xf32>
    %25 = vector.shape_cast %24 : vector<128xf32> to vector<1x128xf32>
    %26 = arith.addf %20, %25 : vector<1x128xf32>
    %27 = arith.mulf %2, %2 : vector<16x128xf32>
    %28 = arith.mulf %6, %6 : vector<16x128xf32>
    %29 = arith.addf %27, %28 : vector<16x128xf32>
    %cst_17 = arith.constant dense<0.000000e+00> : vector<128xf32>
    %30 = vector.multi_reduction <add>, %29, %cst_17 [0] : vector<16x128xf32> to vector<128xf32>
    %31 = vector.shape_cast %30 : vector<128xf32> to vector<1x128xf32>
    %32 = arith.addf %26, %31 : vector<1x128xf32>
    %33 = arith.mulf %3, %3 : vector<16x128xf32>
    %34 = arith.mulf %7, %7 : vector<16x128xf32>
    %35 = arith.addf %33, %34 : vector<16x128xf32>
    %cst_18 = arith.constant dense<0.000000e+00> : vector<128xf32>
    %36 = vector.multi_reduction <add>, %35, %cst_18 [0] : vector<16x128xf32> to vector<128xf32>
    %37 = vector.shape_cast %36 : vector<128xf32> to vector<1x128xf32>
    %38 = arith.addf %32, %37 : vector<1x128xf32>
    %39 = arith.mulf %8, %8 : vector<16x128xf32>
    %40 = arith.mulf %12, %12 : vector<16x128xf32>
    %41 = arith.addf %39, %40 : vector<16x128xf32>
    %cst_19 = arith.constant dense<0.000000e+00> : vector<128xf32>
    %42 = vector.multi_reduction <add>, %41, %cst_19 [0] : vector<16x128xf32> to vector<128xf32>
    %43 = vector.shape_cast %42 : vector<128xf32> to vector<1x128xf32>
    %44 = arith.mulf %9, %9 : vector<16x128xf32>
    %45 = arith.mulf %13, %13 : vector<16x128xf32>
    %46 = arith.addf %44, %45 : vector<16x128xf32>
    %cst_20 = arith.constant dense<0.000000e+00> : vector<128xf32>
    %47 = vector.multi_reduction <add>, %46, %cst_20 [0] : vector<16x128xf32> to vector<128xf32>
    %48 = vector.shape_cast %47 : vector<128xf32> to vector<1x128xf32>
    %49 = arith.addf %43, %48 : vector<1x128xf32>
    %50 = arith.mulf %10, %10 : vector<16x128xf32>
    %51 = arith.mulf %14, %14 : vector<16x128xf32>
    %52 = arith.addf %50, %51 : vector<16x128xf32>
    %cst_21 = arith.constant dense<0.000000e+00> : vector<128xf32>
    %53 = vector.multi_reduction <add>, %52, %cst_21 [0] : vector<16x128xf32> to vector<128xf32>
    %54 = vector.shape_cast %53 : vector<128xf32> to vector<1x128xf32>
    %55 = arith.addf %49, %54 : vector<1x128xf32>
    %56 = arith.mulf %11, %11 : vector<16x128xf32>
    %57 = arith.mulf %15, %15 : vector<16x128xf32>
    %58 = arith.addf %56, %57 : vector<16x128xf32>
    %cst_22 = arith.constant dense<0.000000e+00> : vector<128xf32>
    %59 = vector.multi_reduction <add>, %58, %cst_22 [0] : vector<16x128xf32> to vector<128xf32>
    %60 = vector.shape_cast %59 : vector<128xf32> to vector<1x128xf32>
    %61 = arith.addf %55, %60 : vector<1x128xf32>
    %62 = arith.mulf %61, %38 : vector<1x128xf32>
    %cst_23 = arith.constant 6.400000e+02 : f32
    %63 = vector.broadcast %cst_23 : f32 to vector<1x128xf32>
    %64 = arith.divf %63, %62 : vector<1x128xf32>
    %65 = arith.mulf %61, %61 : vector<1x128xf32>
    %cst_24 = arith.constant 6.400000e+02 : f32
    %66 = vector.broadcast %cst_24 : f32 to vector<1x128xf32>
    %67 = arith.divf %66, %65 : vector<1x128xf32>
    %68 = arith.mulf %0, %8 : vector<16x128xf32>
    %69 = arith.mulf %4, %12 : vector<16x128xf32>
    %70 = arith.addf %68, %69 : vector<16x128xf32>
    %cst_25 = arith.constant dense<0.000000e+00> : vector<128xf32>
    %71 = vector.multi_reduction <add>, %70, %cst_25 [0] : vector<16x128xf32> to vector<128xf32>
    %72 = vector.shape_cast %71 : vector<128xf32> to vector<1x128xf32>
    %73 = arith.mulf %0, %12 : vector<16x128xf32>
    %74 = arith.mulf %4, %8 : vector<16x128xf32>
    %75 = arith.subf %73, %74 : vector<16x128xf32>
    %cst_26 = arith.constant dense<0.000000e+00> : vector<128xf32>
    %76 = vector.multi_reduction <add>, %75, %cst_26 [0] : vector<16x128xf32> to vector<128xf32>
    %77 = vector.shape_cast %76 : vector<128xf32> to vector<1x128xf32>
    %78 = arith.mulf %8, %8 : vector<16x128xf32>
    %79 = arith.mulf %12, %12 : vector<16x128xf32>
    %80 = arith.addf %78, %79 : vector<16x128xf32>
    %cst_27 = arith.constant dense<0.000000e+00> : vector<128xf32>
    %81 = vector.multi_reduction <add>, %80, %cst_27 [0] : vector<16x128xf32> to vector<128xf32>
    %82 = vector.shape_cast %81 : vector<128xf32> to vector<1x128xf32>
    %83 = arith.mulf %8, %12 : vector<16x128xf32>
    %84 = arith.mulf %12, %8 : vector<16x128xf32>
    %85 = arith.subf %83, %84 : vector<16x128xf32>
    %cst_28 = arith.constant dense<0.000000e+00> : vector<128xf32>
    %86 = vector.multi_reduction <add>, %85, %cst_28 [0] : vector<16x128xf32> to vector<128xf32>
    %87 = vector.shape_cast %86 : vector<128xf32> to vector<1x128xf32>
    %88 = arith.mulf %72, %72 : vector<1x128xf32>
    %89 = arith.mulf %77, %77 : vector<1x128xf32>
    %90 = arith.addf %88, %89 : vector<1x128xf32>
    %91 = arith.mulf %90, %64 : vector<1x128xf32>
    %cst_29 = arith.constant 1.000000e+00 : f32
    %92 = vector.broadcast %cst_29 : f32 to vector<1x128xf32>
    %93 = arith.addf %91, %92 : vector<1x128xf32>
    %94 = arith.mulf %82, %82 : vector<1x128xf32>
    %95 = arith.mulf %87, %87 : vector<1x128xf32>
    %96 = arith.addf %94, %95 : vector<1x128xf32>
    %97 = arith.mulf %96, %67 : vector<1x128xf32>
    %cst_30 = arith.constant 1.000000e+00 : f32
    %98 = vector.broadcast %cst_30 : f32 to vector<1x128xf32>
    %99 = arith.addf %97, %98 : vector<1x128xf32>
    %100 = arith.mulf %0, %9 : vector<16x128xf32>
    %101 = arith.mulf %4, %13 : vector<16x128xf32>
    %102 = arith.addf %100, %101 : vector<16x128xf32>
    %cst_31 = arith.constant dense<0.000000e+00> : vector<128xf32>
    %103 = vector.multi_reduction <add>, %102, %cst_31 [0] : vector<16x128xf32> to vector<128xf32>
    %104 = vector.shape_cast %103 : vector<128xf32> to vector<1x128xf32>
    %105 = arith.mulf %0, %13 : vector<16x128xf32>
    %106 = arith.mulf %4, %9 : vector<16x128xf32>
    %107 = arith.subf %105, %106 : vector<16x128xf32>
    %cst_32 = arith.constant dense<0.000000e+00> : vector<128xf32>
    %108 = vector.multi_reduction <add>, %107, %cst_32 [0] : vector<16x128xf32> to vector<128xf32>
    %109 = vector.shape_cast %108 : vector<128xf32> to vector<1x128xf32>
    %110 = arith.mulf %8, %9 : vector<16x128xf32>
    %111 = arith.mulf %12, %13 : vector<16x128xf32>
    %112 = arith.addf %110, %111 : vector<16x128xf32>
    %cst_33 = arith.constant dense<0.000000e+00> : vector<128xf32>
    %113 = vector.multi_reduction <add>, %112, %cst_33 [0] : vector<16x128xf32> to vector<128xf32>
    %114 = vector.shape_cast %113 : vector<128xf32> to vector<1x128xf32>
    %115 = arith.mulf %8, %13 : vector<16x128xf32>
    %116 = arith.mulf %12, %9 : vector<16x128xf32>
    %117 = arith.subf %115, %116 : vector<16x128xf32>
    %cst_34 = arith.constant dense<0.000000e+00> : vector<128xf32>
    %118 = vector.multi_reduction <add>, %117, %cst_34 [0] : vector<16x128xf32> to vector<128xf32>
    %119 = vector.shape_cast %118 : vector<128xf32> to vector<1x128xf32>
    %120 = arith.mulf %104, %104 : vector<1x128xf32>
    %121 = arith.mulf %109, %109 : vector<1x128xf32>
    %122 = arith.addf %120, %121 : vector<1x128xf32>
    %123 = arith.mulf %122, %64 : vector<1x128xf32>
    %cst_35 = arith.constant 0.000000e+00 : f32
    %124 = vector.broadcast %cst_35 : f32 to vector<1x128xf32>
    %125 = arith.addf %123, %124 : vector<1x128xf32>
    %126 = arith.mulf %114, %114 : vector<1x128xf32>
    %127 = arith.mulf %119, %119 : vector<1x128xf32>
    %128 = arith.addf %126, %127 : vector<1x128xf32>
    %129 = arith.mulf %128, %67 : vector<1x128xf32>
    %cst_36 = arith.constant 0.000000e+00 : f32
    %130 = vector.broadcast %cst_36 : f32 to vector<1x128xf32>
    %131 = arith.addf %129, %130 : vector<1x128xf32>
    %132 = arith.mulf %0, %10 : vector<16x128xf32>
    %133 = arith.mulf %4, %14 : vector<16x128xf32>
    %134 = arith.addf %132, %133 : vector<16x128xf32>
    %cst_37 = arith.constant dense<0.000000e+00> : vector<128xf32>
    %135 = vector.multi_reduction <add>, %134, %cst_37 [0] : vector<16x128xf32> to vector<128xf32>
    %136 = vector.shape_cast %135 : vector<128xf32> to vector<1x128xf32>
    %137 = arith.mulf %0, %14 : vector<16x128xf32>
    %138 = arith.mulf %4, %10 : vector<16x128xf32>
    %139 = arith.subf %137, %138 : vector<16x128xf32>
    %cst_38 = arith.constant dense<0.000000e+00> : vector<128xf32>
    %140 = vector.multi_reduction <add>, %139, %cst_38 [0] : vector<16x128xf32> to vector<128xf32>
    %141 = vector.shape_cast %140 : vector<128xf32> to vector<1x128xf32>
    %142 = arith.mulf %8, %10 : vector<16x128xf32>
    %143 = arith.mulf %12, %14 : vector<16x128xf32>
    %144 = arith.addf %142, %143 : vector<16x128xf32>
    %cst_39 = arith.constant dense<0.000000e+00> : vector<128xf32>
    %145 = vector.multi_reduction <add>, %144, %cst_39 [0] : vector<16x128xf32> to vector<128xf32>
    %146 = vector.shape_cast %145 : vector<128xf32> to vector<1x128xf32>
    %147 = arith.mulf %8, %14 : vector<16x128xf32>
    %148 = arith.mulf %12, %10 : vector<16x128xf32>
    %149 = arith.subf %147, %148 : vector<16x128xf32>
    %cst_40 = arith.constant dense<0.000000e+00> : vector<128xf32>
    %150 = vector.multi_reduction <add>, %149, %cst_40 [0] : vector<16x128xf32> to vector<128xf32>
    %151 = vector.shape_cast %150 : vector<128xf32> to vector<1x128xf32>
    %152 = arith.mulf %136, %136 : vector<1x128xf32>
    %153 = arith.mulf %141, %141 : vector<1x128xf32>
    %154 = arith.addf %152, %153 : vector<1x128xf32>
    %155 = arith.mulf %154, %64 : vector<1x128xf32>
    %cst_41 = arith.constant 0.000000e+00 : f32
    %156 = vector.broadcast %cst_41 : f32 to vector<1x128xf32>
    %157 = arith.addf %155, %156 : vector<1x128xf32>
    %158 = arith.mulf %146, %146 : vector<1x128xf32>
    %159 = arith.mulf %151, %151 : vector<1x128xf32>
    %160 = arith.addf %158, %159 : vector<1x128xf32>
    %161 = arith.mulf %160, %67 : vector<1x128xf32>
    %cst_42 = arith.constant 0.000000e+00 : f32
    %162 = vector.broadcast %cst_42 : f32 to vector<1x128xf32>
    %163 = arith.addf %161, %162 : vector<1x128xf32>
    %164 = arith.mulf %0, %11 : vector<16x128xf32>
    %165 = arith.mulf %4, %15 : vector<16x128xf32>
    %166 = arith.addf %164, %165 : vector<16x128xf32>
    %cst_43 = arith.constant dense<0.000000e+00> : vector<128xf32>
    %167 = vector.multi_reduction <add>, %166, %cst_43 [0] : vector<16x128xf32> to vector<128xf32>
    %168 = vector.shape_cast %167 : vector<128xf32> to vector<1x128xf32>
    %169 = arith.mulf %0, %15 : vector<16x128xf32>
    %170 = arith.mulf %4, %11 : vector<16x128xf32>
    %171 = arith.subf %169, %170 : vector<16x128xf32>
    %cst_44 = arith.constant dense<0.000000e+00> : vector<128xf32>
    %172 = vector.multi_reduction <add>, %171, %cst_44 [0] : vector<16x128xf32> to vector<128xf32>
    %173 = vector.shape_cast %172 : vector<128xf32> to vector<1x128xf32>
    %174 = arith.mulf %8, %11 : vector<16x128xf32>
    %175 = arith.mulf %12, %15 : vector<16x128xf32>
    %176 = arith.addf %174, %175 : vector<16x128xf32>
    %cst_45 = arith.constant dense<0.000000e+00> : vector<128xf32>
    %177 = vector.multi_reduction <add>, %176, %cst_45 [0] : vector<16x128xf32> to vector<128xf32>
    %178 = vector.shape_cast %177 : vector<128xf32> to vector<1x128xf32>
    %179 = arith.mulf %8, %15 : vector<16x128xf32>
    %180 = arith.mulf %12, %11 : vector<16x128xf32>
    %181 = arith.subf %179, %180 : vector<16x128xf32>
    %cst_46 = arith.constant dense<0.000000e+00> : vector<128xf32>
    %182 = vector.multi_reduction <add>, %181, %cst_46 [0] : vector<16x128xf32> to vector<128xf32>
    %183 = vector.shape_cast %182 : vector<128xf32> to vector<1x128xf32>
    %184 = arith.mulf %168, %168 : vector<1x128xf32>
    %185 = arith.mulf %173, %173 : vector<1x128xf32>
    %186 = arith.addf %184, %185 : vector<1x128xf32>
    %187 = arith.mulf %186, %64 : vector<1x128xf32>
    %cst_47 = arith.constant 0.000000e+00 : f32
    %188 = vector.broadcast %cst_47 : f32 to vector<1x128xf32>
    %189 = arith.addf %187, %188 : vector<1x128xf32>
    %190 = arith.mulf %178, %178 : vector<1x128xf32>
    %191 = arith.mulf %183, %183 : vector<1x128xf32>
    %192 = arith.addf %190, %191 : vector<1x128xf32>
    %193 = arith.mulf %192, %67 : vector<1x128xf32>
    %cst_48 = arith.constant 0.000000e+00 : f32
    %194 = vector.broadcast %cst_48 : f32 to vector<1x128xf32>
    %195 = arith.addf %193, %194 : vector<1x128xf32>
    %196 = arith.mulf %1, %8 : vector<16x128xf32>
    %197 = arith.mulf %5, %12 : vector<16x128xf32>
    %198 = arith.addf %196, %197 : vector<16x128xf32>
    %cst_49 = arith.constant dense<0.000000e+00> : vector<128xf32>
    %199 = vector.multi_reduction <add>, %198, %cst_49 [0] : vector<16x128xf32> to vector<128xf32>
    %200 = vector.shape_cast %199 : vector<128xf32> to vector<1x128xf32>
    %201 = arith.mulf %1, %12 : vector<16x128xf32>
    %202 = arith.mulf %5, %8 : vector<16x128xf32>
    %203 = arith.subf %201, %202 : vector<16x128xf32>
    %cst_50 = arith.constant dense<0.000000e+00> : vector<128xf32>
    %204 = vector.multi_reduction <add>, %203, %cst_50 [0] : vector<16x128xf32> to vector<128xf32>
    %205 = vector.shape_cast %204 : vector<128xf32> to vector<1x128xf32>
    %206 = arith.mulf %9, %8 : vector<16x128xf32>
    %207 = arith.mulf %13, %12 : vector<16x128xf32>
    %208 = arith.addf %206, %207 : vector<16x128xf32>
    %cst_51 = arith.constant dense<0.000000e+00> : vector<128xf32>
    %209 = vector.multi_reduction <add>, %208, %cst_51 [0] : vector<16x128xf32> to vector<128xf32>
    %210 = vector.shape_cast %209 : vector<128xf32> to vector<1x128xf32>
    %211 = arith.mulf %9, %12 : vector<16x128xf32>
    %212 = arith.mulf %13, %8 : vector<16x128xf32>
    %213 = arith.subf %211, %212 : vector<16x128xf32>
    %cst_52 = arith.constant dense<0.000000e+00> : vector<128xf32>
    %214 = vector.multi_reduction <add>, %213, %cst_52 [0] : vector<16x128xf32> to vector<128xf32>
    %215 = vector.shape_cast %214 : vector<128xf32> to vector<1x128xf32>
    %216 = arith.mulf %200, %200 : vector<1x128xf32>
    %217 = arith.mulf %205, %205 : vector<1x128xf32>
    %218 = arith.addf %216, %217 : vector<1x128xf32>
    %219 = arith.mulf %218, %64 : vector<1x128xf32>
    %cst_53 = arith.constant 0.000000e+00 : f32
    %220 = vector.broadcast %cst_53 : f32 to vector<1x128xf32>
    %221 = arith.addf %219, %220 : vector<1x128xf32>
    %222 = arith.mulf %210, %210 : vector<1x128xf32>
    %223 = arith.mulf %215, %215 : vector<1x128xf32>
    %224 = arith.addf %222, %223 : vector<1x128xf32>
    %225 = arith.mulf %224, %67 : vector<1x128xf32>
    %cst_54 = arith.constant 0.000000e+00 : f32
    %226 = vector.broadcast %cst_54 : f32 to vector<1x128xf32>
    %227 = arith.addf %225, %226 : vector<1x128xf32>
    %228 = arith.mulf %1, %9 : vector<16x128xf32>
    %229 = arith.mulf %5, %13 : vector<16x128xf32>
    %230 = arith.addf %228, %229 : vector<16x128xf32>
    %cst_55 = arith.constant dense<0.000000e+00> : vector<128xf32>
    %231 = vector.multi_reduction <add>, %230, %cst_55 [0] : vector<16x128xf32> to vector<128xf32>
    %232 = vector.shape_cast %231 : vector<128xf32> to vector<1x128xf32>
    %233 = arith.mulf %1, %13 : vector<16x128xf32>
    %234 = arith.mulf %5, %9 : vector<16x128xf32>
    %235 = arith.subf %233, %234 : vector<16x128xf32>
    %cst_56 = arith.constant dense<0.000000e+00> : vector<128xf32>
    %236 = vector.multi_reduction <add>, %235, %cst_56 [0] : vector<16x128xf32> to vector<128xf32>
    %237 = vector.shape_cast %236 : vector<128xf32> to vector<1x128xf32>
    %238 = arith.mulf %9, %9 : vector<16x128xf32>
    %239 = arith.mulf %13, %13 : vector<16x128xf32>
    %240 = arith.addf %238, %239 : vector<16x128xf32>
    %cst_57 = arith.constant dense<0.000000e+00> : vector<128xf32>
    %241 = vector.multi_reduction <add>, %240, %cst_57 [0] : vector<16x128xf32> to vector<128xf32>
    %242 = vector.shape_cast %241 : vector<128xf32> to vector<1x128xf32>
    %243 = arith.mulf %9, %13 : vector<16x128xf32>
    %244 = arith.mulf %13, %9 : vector<16x128xf32>
    %245 = arith.subf %243, %244 : vector<16x128xf32>
    %cst_58 = arith.constant dense<0.000000e+00> : vector<128xf32>
    %246 = vector.multi_reduction <add>, %245, %cst_58 [0] : vector<16x128xf32> to vector<128xf32>
    %247 = vector.shape_cast %246 : vector<128xf32> to vector<1x128xf32>
    %248 = arith.mulf %232, %232 : vector<1x128xf32>
    %249 = arith.mulf %237, %237 : vector<1x128xf32>
    %250 = arith.addf %248, %249 : vector<1x128xf32>
    %251 = arith.mulf %250, %64 : vector<1x128xf32>
    %cst_59 = arith.constant 1.000000e+00 : f32
    %252 = vector.broadcast %cst_59 : f32 to vector<1x128xf32>
    %253 = arith.addf %251, %252 : vector<1x128xf32>
    %254 = arith.mulf %242, %242 : vector<1x128xf32>
    %255 = arith.mulf %247, %247 : vector<1x128xf32>
    %256 = arith.addf %254, %255 : vector<1x128xf32>
    %257 = arith.mulf %256, %67 : vector<1x128xf32>
    %cst_60 = arith.constant 1.000000e+00 : f32
    %258 = vector.broadcast %cst_60 : f32 to vector<1x128xf32>
    %259 = arith.addf %257, %258 : vector<1x128xf32>
    %260 = arith.mulf %1, %10 : vector<16x128xf32>
    %261 = arith.mulf %5, %14 : vector<16x128xf32>
    %262 = arith.addf %260, %261 : vector<16x128xf32>
    %cst_61 = arith.constant dense<0.000000e+00> : vector<128xf32>
    %263 = vector.multi_reduction <add>, %262, %cst_61 [0] : vector<16x128xf32> to vector<128xf32>
    %264 = vector.shape_cast %263 : vector<128xf32> to vector<1x128xf32>
    %265 = arith.mulf %1, %14 : vector<16x128xf32>
    %266 = arith.mulf %5, %10 : vector<16x128xf32>
    %267 = arith.subf %265, %266 : vector<16x128xf32>
    %cst_62 = arith.constant dense<0.000000e+00> : vector<128xf32>
    %268 = vector.multi_reduction <add>, %267, %cst_62 [0] : vector<16x128xf32> to vector<128xf32>
    %269 = vector.shape_cast %268 : vector<128xf32> to vector<1x128xf32>
    %270 = arith.mulf %9, %10 : vector<16x128xf32>
    %271 = arith.mulf %13, %14 : vector<16x128xf32>
    %272 = arith.addf %270, %271 : vector<16x128xf32>
    %cst_63 = arith.constant dense<0.000000e+00> : vector<128xf32>
    %273 = vector.multi_reduction <add>, %272, %cst_63 [0] : vector<16x128xf32> to vector<128xf32>
    %274 = vector.shape_cast %273 : vector<128xf32> to vector<1x128xf32>
    %275 = arith.mulf %9, %14 : vector<16x128xf32>
    %276 = arith.mulf %13, %10 : vector<16x128xf32>
    %277 = arith.subf %275, %276 : vector<16x128xf32>
    %cst_64 = arith.constant dense<0.000000e+00> : vector<128xf32>
    %278 = vector.multi_reduction <add>, %277, %cst_64 [0] : vector<16x128xf32> to vector<128xf32>
    %279 = vector.shape_cast %278 : vector<128xf32> to vector<1x128xf32>
    %280 = arith.mulf %264, %264 : vector<1x128xf32>
    %281 = arith.mulf %269, %269 : vector<1x128xf32>
    %282 = arith.addf %280, %281 : vector<1x128xf32>
    %283 = arith.mulf %282, %64 : vector<1x128xf32>
    %cst_65 = arith.constant 0.000000e+00 : f32
    %284 = vector.broadcast %cst_65 : f32 to vector<1x128xf32>
    %285 = arith.addf %283, %284 : vector<1x128xf32>
    %286 = arith.mulf %274, %274 : vector<1x128xf32>
    %287 = arith.mulf %279, %279 : vector<1x128xf32>
    %288 = arith.addf %286, %287 : vector<1x128xf32>
    %289 = arith.mulf %288, %67 : vector<1x128xf32>
    %cst_66 = arith.constant 0.000000e+00 : f32
    %290 = vector.broadcast %cst_66 : f32 to vector<1x128xf32>
    %291 = arith.addf %289, %290 : vector<1x128xf32>
    %292 = arith.mulf %1, %11 : vector<16x128xf32>
    %293 = arith.mulf %5, %15 : vector<16x128xf32>
    %294 = arith.addf %292, %293 : vector<16x128xf32>
    %cst_67 = arith.constant dense<0.000000e+00> : vector<128xf32>
    %295 = vector.multi_reduction <add>, %294, %cst_67 [0] : vector<16x128xf32> to vector<128xf32>
    %296 = vector.shape_cast %295 : vector<128xf32> to vector<1x128xf32>
    %297 = arith.mulf %1, %15 : vector<16x128xf32>
    %298 = arith.mulf %5, %11 : vector<16x128xf32>
    %299 = arith.subf %297, %298 : vector<16x128xf32>
    %cst_68 = arith.constant dense<0.000000e+00> : vector<128xf32>
    %300 = vector.multi_reduction <add>, %299, %cst_68 [0] : vector<16x128xf32> to vector<128xf32>
    %301 = vector.shape_cast %300 : vector<128xf32> to vector<1x128xf32>
    %302 = arith.mulf %9, %11 : vector<16x128xf32>
    %303 = arith.mulf %13, %15 : vector<16x128xf32>
    %304 = arith.addf %302, %303 : vector<16x128xf32>
    %cst_69 = arith.constant dense<0.000000e+00> : vector<128xf32>
    %305 = vector.multi_reduction <add>, %304, %cst_69 [0] : vector<16x128xf32> to vector<128xf32>
    %306 = vector.shape_cast %305 : vector<128xf32> to vector<1x128xf32>
    %307 = arith.mulf %9, %15 : vector<16x128xf32>
    %308 = arith.mulf %13, %11 : vector<16x128xf32>
    %309 = arith.subf %307, %308 : vector<16x128xf32>
    %cst_70 = arith.constant dense<0.000000e+00> : vector<128xf32>
    %310 = vector.multi_reduction <add>, %309, %cst_70 [0] : vector<16x128xf32> to vector<128xf32>
    %311 = vector.shape_cast %310 : vector<128xf32> to vector<1x128xf32>
    %312 = arith.mulf %296, %296 : vector<1x128xf32>
    %313 = arith.mulf %301, %301 : vector<1x128xf32>
    %314 = arith.addf %312, %313 : vector<1x128xf32>
    %315 = arith.mulf %314, %64 : vector<1x128xf32>
    %cst_71 = arith.constant 0.000000e+00 : f32
    %316 = vector.broadcast %cst_71 : f32 to vector<1x128xf32>
    %317 = arith.addf %315, %316 : vector<1x128xf32>
    %318 = arith.mulf %306, %306 : vector<1x128xf32>
    %319 = arith.mulf %311, %311 : vector<1x128xf32>
    %320 = arith.addf %318, %319 : vector<1x128xf32>
    %321 = arith.mulf %320, %67 : vector<1x128xf32>
    %cst_72 = arith.constant 0.000000e+00 : f32
    %322 = vector.broadcast %cst_72 : f32 to vector<1x128xf32>
    %323 = arith.addf %321, %322 : vector<1x128xf32>
    %324 = arith.mulf %2, %8 : vector<16x128xf32>
    %325 = arith.mulf %6, %12 : vector<16x128xf32>
    %326 = arith.addf %324, %325 : vector<16x128xf32>
    %cst_73 = arith.constant dense<0.000000e+00> : vector<128xf32>
    %327 = vector.multi_reduction <add>, %326, %cst_73 [0] : vector<16x128xf32> to vector<128xf32>
    %328 = vector.shape_cast %327 : vector<128xf32> to vector<1x128xf32>
    %329 = arith.mulf %2, %12 : vector<16x128xf32>
    %330 = arith.mulf %6, %8 : vector<16x128xf32>
    %331 = arith.subf %329, %330 : vector<16x128xf32>
    %cst_74 = arith.constant dense<0.000000e+00> : vector<128xf32>
    %332 = vector.multi_reduction <add>, %331, %cst_74 [0] : vector<16x128xf32> to vector<128xf32>
    %333 = vector.shape_cast %332 : vector<128xf32> to vector<1x128xf32>
    %334 = arith.mulf %10, %8 : vector<16x128xf32>
    %335 = arith.mulf %14, %12 : vector<16x128xf32>
    %336 = arith.addf %334, %335 : vector<16x128xf32>
    %cst_75 = arith.constant dense<0.000000e+00> : vector<128xf32>
    %337 = vector.multi_reduction <add>, %336, %cst_75 [0] : vector<16x128xf32> to vector<128xf32>
    %338 = vector.shape_cast %337 : vector<128xf32> to vector<1x128xf32>
    %339 = arith.mulf %10, %12 : vector<16x128xf32>
    %340 = arith.mulf %14, %8 : vector<16x128xf32>
    %341 = arith.subf %339, %340 : vector<16x128xf32>
    %cst_76 = arith.constant dense<0.000000e+00> : vector<128xf32>
    %342 = vector.multi_reduction <add>, %341, %cst_76 [0] : vector<16x128xf32> to vector<128xf32>
    %343 = vector.shape_cast %342 : vector<128xf32> to vector<1x128xf32>
    %344 = arith.mulf %328, %328 : vector<1x128xf32>
    %345 = arith.mulf %333, %333 : vector<1x128xf32>
    %346 = arith.addf %344, %345 : vector<1x128xf32>
    %347 = arith.mulf %346, %64 : vector<1x128xf32>
    %cst_77 = arith.constant 0.000000e+00 : f32
    %348 = vector.broadcast %cst_77 : f32 to vector<1x128xf32>
    %349 = arith.addf %347, %348 : vector<1x128xf32>
    %350 = arith.mulf %338, %338 : vector<1x128xf32>
    %351 = arith.mulf %343, %343 : vector<1x128xf32>
    %352 = arith.addf %350, %351 : vector<1x128xf32>
    %353 = arith.mulf %352, %67 : vector<1x128xf32>
    %cst_78 = arith.constant 0.000000e+00 : f32
    %354 = vector.broadcast %cst_78 : f32 to vector<1x128xf32>
    %355 = arith.addf %353, %354 : vector<1x128xf32>
    %356 = arith.mulf %2, %9 : vector<16x128xf32>
    %357 = arith.mulf %6, %13 : vector<16x128xf32>
    %358 = arith.addf %356, %357 : vector<16x128xf32>
    %cst_79 = arith.constant dense<0.000000e+00> : vector<128xf32>
    %359 = vector.multi_reduction <add>, %358, %cst_79 [0] : vector<16x128xf32> to vector<128xf32>
    %360 = vector.shape_cast %359 : vector<128xf32> to vector<1x128xf32>
    %361 = arith.mulf %2, %13 : vector<16x128xf32>
    %362 = arith.mulf %6, %9 : vector<16x128xf32>
    %363 = arith.subf %361, %362 : vector<16x128xf32>
    %cst_80 = arith.constant dense<0.000000e+00> : vector<128xf32>
    %364 = vector.multi_reduction <add>, %363, %cst_80 [0] : vector<16x128xf32> to vector<128xf32>
    %365 = vector.shape_cast %364 : vector<128xf32> to vector<1x128xf32>
    %366 = arith.mulf %10, %9 : vector<16x128xf32>
    %367 = arith.mulf %14, %13 : vector<16x128xf32>
    %368 = arith.addf %366, %367 : vector<16x128xf32>
    %cst_81 = arith.constant dense<0.000000e+00> : vector<128xf32>
    %369 = vector.multi_reduction <add>, %368, %cst_81 [0] : vector<16x128xf32> to vector<128xf32>
    %370 = vector.shape_cast %369 : vector<128xf32> to vector<1x128xf32>
    %371 = arith.mulf %10, %13 : vector<16x128xf32>
    %372 = arith.mulf %14, %9 : vector<16x128xf32>
    %373 = arith.subf %371, %372 : vector<16x128xf32>
    %cst_82 = arith.constant dense<0.000000e+00> : vector<128xf32>
    %374 = vector.multi_reduction <add>, %373, %cst_82 [0] : vector<16x128xf32> to vector<128xf32>
    %375 = vector.shape_cast %374 : vector<128xf32> to vector<1x128xf32>
    %376 = arith.mulf %360, %360 : vector<1x128xf32>
    %377 = arith.mulf %365, %365 : vector<1x128xf32>
    %378 = arith.addf %376, %377 : vector<1x128xf32>
    %379 = arith.mulf %378, %64 : vector<1x128xf32>
    %cst_83 = arith.constant 0.000000e+00 : f32
    %380 = vector.broadcast %cst_83 : f32 to vector<1x128xf32>
    %381 = arith.addf %379, %380 : vector<1x128xf32>
    %382 = arith.mulf %370, %370 : vector<1x128xf32>
    %383 = arith.mulf %375, %375 : vector<1x128xf32>
    %384 = arith.addf %382, %383 : vector<1x128xf32>
    %385 = arith.mulf %384, %67 : vector<1x128xf32>
    %cst_84 = arith.constant 0.000000e+00 : f32
    %386 = vector.broadcast %cst_84 : f32 to vector<1x128xf32>
    %387 = arith.addf %385, %386 : vector<1x128xf32>
    %388 = arith.mulf %2, %10 : vector<16x128xf32>
    %389 = arith.mulf %6, %14 : vector<16x128xf32>
    %390 = arith.addf %388, %389 : vector<16x128xf32>
    %cst_85 = arith.constant dense<0.000000e+00> : vector<128xf32>
    %391 = vector.multi_reduction <add>, %390, %cst_85 [0] : vector<16x128xf32> to vector<128xf32>
    %392 = vector.shape_cast %391 : vector<128xf32> to vector<1x128xf32>
    %393 = arith.mulf %2, %14 : vector<16x128xf32>
    %394 = arith.mulf %6, %10 : vector<16x128xf32>
    %395 = arith.subf %393, %394 : vector<16x128xf32>
    %cst_86 = arith.constant dense<0.000000e+00> : vector<128xf32>
    %396 = vector.multi_reduction <add>, %395, %cst_86 [0] : vector<16x128xf32> to vector<128xf32>
    %397 = vector.shape_cast %396 : vector<128xf32> to vector<1x128xf32>
    %398 = arith.mulf %10, %10 : vector<16x128xf32>
    %399 = arith.mulf %14, %14 : vector<16x128xf32>
    %400 = arith.addf %398, %399 : vector<16x128xf32>
    %cst_87 = arith.constant dense<0.000000e+00> : vector<128xf32>
    %401 = vector.multi_reduction <add>, %400, %cst_87 [0] : vector<16x128xf32> to vector<128xf32>
    %402 = vector.shape_cast %401 : vector<128xf32> to vector<1x128xf32>
    %403 = arith.mulf %10, %14 : vector<16x128xf32>
    %404 = arith.mulf %14, %10 : vector<16x128xf32>
    %405 = arith.subf %403, %404 : vector<16x128xf32>
    %cst_88 = arith.constant dense<0.000000e+00> : vector<128xf32>
    %406 = vector.multi_reduction <add>, %405, %cst_88 [0] : vector<16x128xf32> to vector<128xf32>
    %407 = vector.shape_cast %406 : vector<128xf32> to vector<1x128xf32>
    %408 = arith.mulf %392, %392 : vector<1x128xf32>
    %409 = arith.mulf %397, %397 : vector<1x128xf32>
    %410 = arith.addf %408, %409 : vector<1x128xf32>
    %411 = arith.mulf %410, %64 : vector<1x128xf32>
    %cst_89 = arith.constant 1.000000e+00 : f32
    %412 = vector.broadcast %cst_89 : f32 to vector<1x128xf32>
    %413 = arith.addf %411, %412 : vector<1x128xf32>
    %414 = arith.mulf %402, %402 : vector<1x128xf32>
    %415 = arith.mulf %407, %407 : vector<1x128xf32>
    %416 = arith.addf %414, %415 : vector<1x128xf32>
    %417 = arith.mulf %416, %67 : vector<1x128xf32>
    %cst_90 = arith.constant 1.000000e+00 : f32
    %418 = vector.broadcast %cst_90 : f32 to vector<1x128xf32>
    %419 = arith.addf %417, %418 : vector<1x128xf32>
    %420 = arith.mulf %2, %11 : vector<16x128xf32>
    %421 = arith.mulf %6, %15 : vector<16x128xf32>
    %422 = arith.addf %420, %421 : vector<16x128xf32>
    %cst_91 = arith.constant dense<0.000000e+00> : vector<128xf32>
    %423 = vector.multi_reduction <add>, %422, %cst_91 [0] : vector<16x128xf32> to vector<128xf32>
    %424 = vector.shape_cast %423 : vector<128xf32> to vector<1x128xf32>
    %425 = arith.mulf %2, %15 : vector<16x128xf32>
    %426 = arith.mulf %6, %11 : vector<16x128xf32>
    %427 = arith.subf %425, %426 : vector<16x128xf32>
    %cst_92 = arith.constant dense<0.000000e+00> : vector<128xf32>
    %428 = vector.multi_reduction <add>, %427, %cst_92 [0] : vector<16x128xf32> to vector<128xf32>
    %429 = vector.shape_cast %428 : vector<128xf32> to vector<1x128xf32>
    %430 = arith.mulf %10, %11 : vector<16x128xf32>
    %431 = arith.mulf %14, %15 : vector<16x128xf32>
    %432 = arith.addf %430, %431 : vector<16x128xf32>
    %cst_93 = arith.constant dense<0.000000e+00> : vector<128xf32>
    %433 = vector.multi_reduction <add>, %432, %cst_93 [0] : vector<16x128xf32> to vector<128xf32>
    %434 = vector.shape_cast %433 : vector<128xf32> to vector<1x128xf32>
    %435 = arith.mulf %10, %15 : vector<16x128xf32>
    %436 = arith.mulf %14, %11 : vector<16x128xf32>
    %437 = arith.subf %435, %436 : vector<16x128xf32>
    %cst_94 = arith.constant dense<0.000000e+00> : vector<128xf32>
    %438 = vector.multi_reduction <add>, %437, %cst_94 [0] : vector<16x128xf32> to vector<128xf32>
    %439 = vector.shape_cast %438 : vector<128xf32> to vector<1x128xf32>
    %440 = arith.mulf %424, %424 : vector<1x128xf32>
    %441 = arith.mulf %429, %429 : vector<1x128xf32>
    %442 = arith.addf %440, %441 : vector<1x128xf32>
    %443 = arith.mulf %442, %64 : vector<1x128xf32>
    %cst_95 = arith.constant 0.000000e+00 : f32
    %444 = vector.broadcast %cst_95 : f32 to vector<1x128xf32>
    %445 = arith.addf %443, %444 : vector<1x128xf32>
    %446 = arith.mulf %434, %434 : vector<1x128xf32>
    %447 = arith.mulf %439, %439 : vector<1x128xf32>
    %448 = arith.addf %446, %447 : vector<1x128xf32>
    %449 = arith.mulf %448, %67 : vector<1x128xf32>
    %cst_96 = arith.constant 0.000000e+00 : f32
    %450 = vector.broadcast %cst_96 : f32 to vector<1x128xf32>
    %451 = arith.addf %449, %450 : vector<1x128xf32>
    %452 = arith.mulf %3, %8 : vector<16x128xf32>
    %453 = arith.mulf %7, %12 : vector<16x128xf32>
    %454 = arith.addf %452, %453 : vector<16x128xf32>
    %cst_97 = arith.constant dense<0.000000e+00> : vector<128xf32>
    %455 = vector.multi_reduction <add>, %454, %cst_97 [0] : vector<16x128xf32> to vector<128xf32>
    %456 = vector.shape_cast %455 : vector<128xf32> to vector<1x128xf32>
    %457 = arith.mulf %3, %12 : vector<16x128xf32>
    %458 = arith.mulf %7, %8 : vector<16x128xf32>
    %459 = arith.subf %457, %458 : vector<16x128xf32>
    %cst_98 = arith.constant dense<0.000000e+00> : vector<128xf32>
    %460 = vector.multi_reduction <add>, %459, %cst_98 [0] : vector<16x128xf32> to vector<128xf32>
    %461 = vector.shape_cast %460 : vector<128xf32> to vector<1x128xf32>
    %462 = arith.mulf %11, %8 : vector<16x128xf32>
    %463 = arith.mulf %15, %12 : vector<16x128xf32>
    %464 = arith.addf %462, %463 : vector<16x128xf32>
    %cst_99 = arith.constant dense<0.000000e+00> : vector<128xf32>
    %465 = vector.multi_reduction <add>, %464, %cst_99 [0] : vector<16x128xf32> to vector<128xf32>
    %466 = vector.shape_cast %465 : vector<128xf32> to vector<1x128xf32>
    %467 = arith.mulf %11, %12 : vector<16x128xf32>
    %468 = arith.mulf %15, %8 : vector<16x128xf32>
    %469 = arith.subf %467, %468 : vector<16x128xf32>
    %cst_100 = arith.constant dense<0.000000e+00> : vector<128xf32>
    %470 = vector.multi_reduction <add>, %469, %cst_100 [0] : vector<16x128xf32> to vector<128xf32>
    %471 = vector.shape_cast %470 : vector<128xf32> to vector<1x128xf32>
    %472 = arith.mulf %456, %456 : vector<1x128xf32>
    %473 = arith.mulf %461, %461 : vector<1x128xf32>
    %474 = arith.addf %472, %473 : vector<1x128xf32>
    %475 = arith.mulf %474, %64 : vector<1x128xf32>
    %cst_101 = arith.constant 0.000000e+00 : f32
    %476 = vector.broadcast %cst_101 : f32 to vector<1x128xf32>
    %477 = arith.addf %475, %476 : vector<1x128xf32>
    %478 = arith.mulf %466, %466 : vector<1x128xf32>
    %479 = arith.mulf %471, %471 : vector<1x128xf32>
    %480 = arith.addf %478, %479 : vector<1x128xf32>
    %481 = arith.mulf %480, %67 : vector<1x128xf32>
    %cst_102 = arith.constant 0.000000e+00 : f32
    %482 = vector.broadcast %cst_102 : f32 to vector<1x128xf32>
    %483 = arith.addf %481, %482 : vector<1x128xf32>
    %484 = arith.mulf %3, %9 : vector<16x128xf32>
    %485 = arith.mulf %7, %13 : vector<16x128xf32>
    %486 = arith.addf %484, %485 : vector<16x128xf32>
    %cst_103 = arith.constant dense<0.000000e+00> : vector<128xf32>
    %487 = vector.multi_reduction <add>, %486, %cst_103 [0] : vector<16x128xf32> to vector<128xf32>
    %488 = vector.shape_cast %487 : vector<128xf32> to vector<1x128xf32>
    %489 = arith.mulf %3, %13 : vector<16x128xf32>
    %490 = arith.mulf %7, %9 : vector<16x128xf32>
    %491 = arith.subf %489, %490 : vector<16x128xf32>
    %cst_104 = arith.constant dense<0.000000e+00> : vector<128xf32>
    %492 = vector.multi_reduction <add>, %491, %cst_104 [0] : vector<16x128xf32> to vector<128xf32>
    %493 = vector.shape_cast %492 : vector<128xf32> to vector<1x128xf32>
    %494 = arith.mulf %11, %9 : vector<16x128xf32>
    %495 = arith.mulf %15, %13 : vector<16x128xf32>
    %496 = arith.addf %494, %495 : vector<16x128xf32>
    %cst_105 = arith.constant dense<0.000000e+00> : vector<128xf32>
    %497 = vector.multi_reduction <add>, %496, %cst_105 [0] : vector<16x128xf32> to vector<128xf32>
    %498 = vector.shape_cast %497 : vector<128xf32> to vector<1x128xf32>
    %499 = arith.mulf %11, %13 : vector<16x128xf32>
    %500 = arith.mulf %15, %9 : vector<16x128xf32>
    %501 = arith.subf %499, %500 : vector<16x128xf32>
    %cst_106 = arith.constant dense<0.000000e+00> : vector<128xf32>
    %502 = vector.multi_reduction <add>, %501, %cst_106 [0] : vector<16x128xf32> to vector<128xf32>
    %503 = vector.shape_cast %502 : vector<128xf32> to vector<1x128xf32>
    %504 = arith.mulf %488, %488 : vector<1x128xf32>
    %505 = arith.mulf %493, %493 : vector<1x128xf32>
    %506 = arith.addf %504, %505 : vector<1x128xf32>
    %507 = arith.mulf %506, %64 : vector<1x128xf32>
    %cst_107 = arith.constant 0.000000e+00 : f32
    %508 = vector.broadcast %cst_107 : f32 to vector<1x128xf32>
    %509 = arith.addf %507, %508 : vector<1x128xf32>
    %510 = arith.mulf %498, %498 : vector<1x128xf32>
    %511 = arith.mulf %503, %503 : vector<1x128xf32>
    %512 = arith.addf %510, %511 : vector<1x128xf32>
    %513 = arith.mulf %512, %67 : vector<1x128xf32>
    %cst_108 = arith.constant 0.000000e+00 : f32
    %514 = vector.broadcast %cst_108 : f32 to vector<1x128xf32>
    %515 = arith.addf %513, %514 : vector<1x128xf32>
    %516 = arith.mulf %3, %10 : vector<16x128xf32>
    %517 = arith.mulf %7, %14 : vector<16x128xf32>
    %518 = arith.addf %516, %517 : vector<16x128xf32>
    %cst_109 = arith.constant dense<0.000000e+00> : vector<128xf32>
    %519 = vector.multi_reduction <add>, %518, %cst_109 [0] : vector<16x128xf32> to vector<128xf32>
    %520 = vector.shape_cast %519 : vector<128xf32> to vector<1x128xf32>
    %521 = arith.mulf %3, %14 : vector<16x128xf32>
    %522 = arith.mulf %7, %10 : vector<16x128xf32>
    %523 = arith.subf %521, %522 : vector<16x128xf32>
    %cst_110 = arith.constant dense<0.000000e+00> : vector<128xf32>
    %524 = vector.multi_reduction <add>, %523, %cst_110 [0] : vector<16x128xf32> to vector<128xf32>
    %525 = vector.shape_cast %524 : vector<128xf32> to vector<1x128xf32>
    %526 = arith.mulf %11, %10 : vector<16x128xf32>
    %527 = arith.mulf %15, %14 : vector<16x128xf32>
    %528 = arith.addf %526, %527 : vector<16x128xf32>
    %cst_111 = arith.constant dense<0.000000e+00> : vector<128xf32>
    %529 = vector.multi_reduction <add>, %528, %cst_111 [0] : vector<16x128xf32> to vector<128xf32>
    %530 = vector.shape_cast %529 : vector<128xf32> to vector<1x128xf32>
    %531 = arith.mulf %11, %14 : vector<16x128xf32>
    %532 = arith.mulf %15, %10 : vector<16x128xf32>
    %533 = arith.subf %531, %532 : vector<16x128xf32>
    %cst_112 = arith.constant dense<0.000000e+00> : vector<128xf32>
    %534 = vector.multi_reduction <add>, %533, %cst_112 [0] : vector<16x128xf32> to vector<128xf32>
    %535 = vector.shape_cast %534 : vector<128xf32> to vector<1x128xf32>
    %536 = arith.mulf %520, %520 : vector<1x128xf32>
    %537 = arith.mulf %525, %525 : vector<1x128xf32>
    %538 = arith.addf %536, %537 : vector<1x128xf32>
    %539 = arith.mulf %538, %64 : vector<1x128xf32>
    %cst_113 = arith.constant 0.000000e+00 : f32
    %540 = vector.broadcast %cst_113 : f32 to vector<1x128xf32>
    %541 = arith.addf %539, %540 : vector<1x128xf32>
    %542 = arith.mulf %530, %530 : vector<1x128xf32>
    %543 = arith.mulf %535, %535 : vector<1x128xf32>
    %544 = arith.addf %542, %543 : vector<1x128xf32>
    %545 = arith.mulf %544, %67 : vector<1x128xf32>
    %cst_114 = arith.constant 0.000000e+00 : f32
    %546 = vector.broadcast %cst_114 : f32 to vector<1x128xf32>
    %547 = arith.addf %545, %546 : vector<1x128xf32>
    %548 = arith.mulf %3, %11 : vector<16x128xf32>
    %549 = arith.mulf %7, %15 : vector<16x128xf32>
    %550 = arith.addf %548, %549 : vector<16x128xf32>
    %cst_115 = arith.constant dense<0.000000e+00> : vector<128xf32>
    %551 = vector.multi_reduction <add>, %550, %cst_115 [0] : vector<16x128xf32> to vector<128xf32>
    %552 = vector.shape_cast %551 : vector<128xf32> to vector<1x128xf32>
    %553 = arith.mulf %3, %15 : vector<16x128xf32>
    %554 = arith.mulf %7, %11 : vector<16x128xf32>
    %555 = arith.subf %553, %554 : vector<16x128xf32>
    %cst_116 = arith.constant dense<0.000000e+00> : vector<128xf32>
    %556 = vector.multi_reduction <add>, %555, %cst_116 [0] : vector<16x128xf32> to vector<128xf32>
    %557 = vector.shape_cast %556 : vector<128xf32> to vector<1x128xf32>
    %558 = arith.mulf %11, %11 : vector<16x128xf32>
    %559 = arith.mulf %15, %15 : vector<16x128xf32>
    %560 = arith.addf %558, %559 : vector<16x128xf32>
    %cst_117 = arith.constant dense<0.000000e+00> : vector<128xf32>
    %561 = vector.multi_reduction <add>, %560, %cst_117 [0] : vector<16x128xf32> to vector<128xf32>
    %562 = vector.shape_cast %561 : vector<128xf32> to vector<1x128xf32>
    %563 = arith.mulf %11, %15 : vector<16x128xf32>
    %564 = arith.mulf %15, %11 : vector<16x128xf32>
    %565 = arith.subf %563, %564 : vector<16x128xf32>
    %cst_118 = arith.constant dense<0.000000e+00> : vector<128xf32>
    %566 = vector.multi_reduction <add>, %565, %cst_118 [0] : vector<16x128xf32> to vector<128xf32>
    %567 = vector.shape_cast %566 : vector<128xf32> to vector<1x128xf32>
    %568 = arith.mulf %552, %552 : vector<1x128xf32>
    %569 = arith.mulf %557, %557 : vector<1x128xf32>
    %570 = arith.addf %568, %569 : vector<1x128xf32>
    %571 = arith.mulf %570, %64 : vector<1x128xf32>
    %cst_119 = arith.constant 1.000000e+00 : f32
    %572 = vector.broadcast %cst_119 : f32 to vector<1x128xf32>
    %573 = arith.addf %571, %572 : vector<1x128xf32>
    %574 = arith.mulf %562, %562 : vector<1x128xf32>
    %575 = arith.mulf %567, %567 : vector<1x128xf32>
    %576 = arith.addf %574, %575 : vector<1x128xf32>
    %577 = arith.mulf %576, %67 : vector<1x128xf32>
    %cst_120 = arith.constant 1.000000e+00 : f32
    %578 = vector.broadcast %cst_120 : f32 to vector<1x128xf32>
    %579 = arith.addf %577, %578 : vector<1x128xf32>
    %580 = arith.mulf %413, %573 : vector<1x128xf32>
    %cst_121 = arith.constant 1.000000e+00 : f32
    %581 = vector.broadcast %cst_121 : f32 to vector<1x128xf32>
    %582 = arith.mulf %581, %580 : vector<1x128xf32>
    %583 = arith.mulf %445, %541 : vector<1x128xf32>
    %cst_122 = arith.constant -1.000000e+00 : f32
    %584 = vector.broadcast %cst_122 : f32 to vector<1x128xf32>
    %585 = arith.mulf %584, %583 : vector<1x128xf32>
    %586 = arith.addf %582, %585 : vector<1x128xf32>
    %587 = arith.mulf %253, %586 : vector<1x128xf32>
    %cst_123 = arith.constant 1.000000e+00 : f32
    %588 = vector.broadcast %cst_123 : f32 to vector<1x128xf32>
    %589 = arith.mulf %588, %587 : vector<1x128xf32>
    %590 = arith.mulf %381, %573 : vector<1x128xf32>
    %cst_124 = arith.constant 1.000000e+00 : f32
    %591 = vector.broadcast %cst_124 : f32 to vector<1x128xf32>
    %592 = arith.mulf %591, %590 : vector<1x128xf32>
    %593 = arith.mulf %445, %509 : vector<1x128xf32>
    %cst_125 = arith.constant -1.000000e+00 : f32
    %594 = vector.broadcast %cst_125 : f32 to vector<1x128xf32>
    %595 = arith.mulf %594, %593 : vector<1x128xf32>
    %596 = arith.addf %592, %595 : vector<1x128xf32>
    %597 = arith.mulf %285, %596 : vector<1x128xf32>
    %cst_126 = arith.constant -1.000000e+00 : f32
    %598 = vector.broadcast %cst_126 : f32 to vector<1x128xf32>
    %599 = arith.mulf %598, %597 : vector<1x128xf32>
    %600 = arith.addf %589, %599 : vector<1x128xf32>
    %601 = arith.mulf %381, %541 : vector<1x128xf32>
    %cst_127 = arith.constant 1.000000e+00 : f32
    %602 = vector.broadcast %cst_127 : f32 to vector<1x128xf32>
    %603 = arith.mulf %602, %601 : vector<1x128xf32>
    %604 = arith.mulf %413, %509 : vector<1x128xf32>
    %cst_128 = arith.constant -1.000000e+00 : f32
    %605 = vector.broadcast %cst_128 : f32 to vector<1x128xf32>
    %606 = arith.mulf %605, %604 : vector<1x128xf32>
    %607 = arith.addf %603, %606 : vector<1x128xf32>
    %608 = arith.mulf %317, %607 : vector<1x128xf32>
    %cst_129 = arith.constant 1.000000e+00 : f32
    %609 = vector.broadcast %cst_129 : f32 to vector<1x128xf32>
    %610 = arith.mulf %609, %608 : vector<1x128xf32>
    %611 = arith.addf %600, %610 : vector<1x128xf32>
    %612 = arith.mulf %93, %611 : vector<1x128xf32>
    %cst_130 = arith.constant 1.000000e+00 : f32
    %613 = vector.broadcast %cst_130 : f32 to vector<1x128xf32>
    %614 = arith.mulf %613, %612 : vector<1x128xf32>
    %615 = arith.mulf %413, %573 : vector<1x128xf32>
    %cst_131 = arith.constant 1.000000e+00 : f32
    %616 = vector.broadcast %cst_131 : f32 to vector<1x128xf32>
    %617 = arith.mulf %616, %615 : vector<1x128xf32>
    %618 = arith.mulf %445, %541 : vector<1x128xf32>
    %cst_132 = arith.constant -1.000000e+00 : f32
    %619 = vector.broadcast %cst_132 : f32 to vector<1x128xf32>
    %620 = arith.mulf %619, %618 : vector<1x128xf32>
    %621 = arith.addf %617, %620 : vector<1x128xf32>
    %622 = arith.mulf %221, %621 : vector<1x128xf32>
    %cst_133 = arith.constant 1.000000e+00 : f32
    %623 = vector.broadcast %cst_133 : f32 to vector<1x128xf32>
    %624 = arith.mulf %623, %622 : vector<1x128xf32>
    %625 = arith.mulf %349, %573 : vector<1x128xf32>
    %cst_134 = arith.constant 1.000000e+00 : f32
    %626 = vector.broadcast %cst_134 : f32 to vector<1x128xf32>
    %627 = arith.mulf %626, %625 : vector<1x128xf32>
    %628 = arith.mulf %445, %477 : vector<1x128xf32>
    %cst_135 = arith.constant -1.000000e+00 : f32
    %629 = vector.broadcast %cst_135 : f32 to vector<1x128xf32>
    %630 = arith.mulf %629, %628 : vector<1x128xf32>
    %631 = arith.addf %627, %630 : vector<1x128xf32>
    %632 = arith.mulf %285, %631 : vector<1x128xf32>
    %cst_136 = arith.constant -1.000000e+00 : f32
    %633 = vector.broadcast %cst_136 : f32 to vector<1x128xf32>
    %634 = arith.mulf %633, %632 : vector<1x128xf32>
    %635 = arith.addf %624, %634 : vector<1x128xf32>
    %636 = arith.mulf %349, %541 : vector<1x128xf32>
    %cst_137 = arith.constant 1.000000e+00 : f32
    %637 = vector.broadcast %cst_137 : f32 to vector<1x128xf32>
    %638 = arith.mulf %637, %636 : vector<1x128xf32>
    %639 = arith.mulf %413, %477 : vector<1x128xf32>
    %cst_138 = arith.constant -1.000000e+00 : f32
    %640 = vector.broadcast %cst_138 : f32 to vector<1x128xf32>
    %641 = arith.mulf %640, %639 : vector<1x128xf32>
    %642 = arith.addf %638, %641 : vector<1x128xf32>
    %643 = arith.mulf %317, %642 : vector<1x128xf32>
    %cst_139 = arith.constant 1.000000e+00 : f32
    %644 = vector.broadcast %cst_139 : f32 to vector<1x128xf32>
    %645 = arith.mulf %644, %643 : vector<1x128xf32>
    %646 = arith.addf %635, %645 : vector<1x128xf32>
    %647 = arith.mulf %125, %646 : vector<1x128xf32>
    %cst_140 = arith.constant -1.000000e+00 : f32
    %648 = vector.broadcast %cst_140 : f32 to vector<1x128xf32>
    %649 = arith.mulf %648, %647 : vector<1x128xf32>
    %650 = arith.addf %614, %649 : vector<1x128xf32>
    %651 = arith.mulf %381, %573 : vector<1x128xf32>
    %cst_141 = arith.constant 1.000000e+00 : f32
    %652 = vector.broadcast %cst_141 : f32 to vector<1x128xf32>
    %653 = arith.mulf %652, %651 : vector<1x128xf32>
    %654 = arith.mulf %445, %509 : vector<1x128xf32>
    %cst_142 = arith.constant -1.000000e+00 : f32
    %655 = vector.broadcast %cst_142 : f32 to vector<1x128xf32>
    %656 = arith.mulf %655, %654 : vector<1x128xf32>
    %657 = arith.addf %653, %656 : vector<1x128xf32>
    %658 = arith.mulf %221, %657 : vector<1x128xf32>
    %cst_143 = arith.constant 1.000000e+00 : f32
    %659 = vector.broadcast %cst_143 : f32 to vector<1x128xf32>
    %660 = arith.mulf %659, %658 : vector<1x128xf32>
    %661 = arith.mulf %349, %573 : vector<1x128xf32>
    %cst_144 = arith.constant 1.000000e+00 : f32
    %662 = vector.broadcast %cst_144 : f32 to vector<1x128xf32>
    %663 = arith.mulf %662, %661 : vector<1x128xf32>
    %664 = arith.mulf %445, %477 : vector<1x128xf32>
    %cst_145 = arith.constant -1.000000e+00 : f32
    %665 = vector.broadcast %cst_145 : f32 to vector<1x128xf32>
    %666 = arith.mulf %665, %664 : vector<1x128xf32>
    %667 = arith.addf %663, %666 : vector<1x128xf32>
    %668 = arith.mulf %253, %667 : vector<1x128xf32>
    %cst_146 = arith.constant -1.000000e+00 : f32
    %669 = vector.broadcast %cst_146 : f32 to vector<1x128xf32>
    %670 = arith.mulf %669, %668 : vector<1x128xf32>
    %671 = arith.addf %660, %670 : vector<1x128xf32>
    %672 = arith.mulf %349, %509 : vector<1x128xf32>
    %cst_147 = arith.constant 1.000000e+00 : f32
    %673 = vector.broadcast %cst_147 : f32 to vector<1x128xf32>
    %674 = arith.mulf %673, %672 : vector<1x128xf32>
    %675 = arith.mulf %381, %477 : vector<1x128xf32>
    %cst_148 = arith.constant -1.000000e+00 : f32
    %676 = vector.broadcast %cst_148 : f32 to vector<1x128xf32>
    %677 = arith.mulf %676, %675 : vector<1x128xf32>
    %678 = arith.addf %674, %677 : vector<1x128xf32>
    %679 = arith.mulf %317, %678 : vector<1x128xf32>
    %cst_149 = arith.constant 1.000000e+00 : f32
    %680 = vector.broadcast %cst_149 : f32 to vector<1x128xf32>
    %681 = arith.mulf %680, %679 : vector<1x128xf32>
    %682 = arith.addf %671, %681 : vector<1x128xf32>
    %683 = arith.mulf %157, %682 : vector<1x128xf32>
    %cst_150 = arith.constant 1.000000e+00 : f32
    %684 = vector.broadcast %cst_150 : f32 to vector<1x128xf32>
    %685 = arith.mulf %684, %683 : vector<1x128xf32>
    %686 = arith.addf %650, %685 : vector<1x128xf32>
    %687 = arith.mulf %381, %541 : vector<1x128xf32>
    %cst_151 = arith.constant 1.000000e+00 : f32
    %688 = vector.broadcast %cst_151 : f32 to vector<1x128xf32>
    %689 = arith.mulf %688, %687 : vector<1x128xf32>
    %690 = arith.mulf %413, %509 : vector<1x128xf32>
    %cst_152 = arith.constant -1.000000e+00 : f32
    %691 = vector.broadcast %cst_152 : f32 to vector<1x128xf32>
    %692 = arith.mulf %691, %690 : vector<1x128xf32>
    %693 = arith.addf %689, %692 : vector<1x128xf32>
    %694 = arith.mulf %221, %693 : vector<1x128xf32>
    %cst_153 = arith.constant 1.000000e+00 : f32
    %695 = vector.broadcast %cst_153 : f32 to vector<1x128xf32>
    %696 = arith.mulf %695, %694 : vector<1x128xf32>
    %697 = arith.mulf %349, %541 : vector<1x128xf32>
    %cst_154 = arith.constant 1.000000e+00 : f32
    %698 = vector.broadcast %cst_154 : f32 to vector<1x128xf32>
    %699 = arith.mulf %698, %697 : vector<1x128xf32>
    %700 = arith.mulf %413, %477 : vector<1x128xf32>
    %cst_155 = arith.constant -1.000000e+00 : f32
    %701 = vector.broadcast %cst_155 : f32 to vector<1x128xf32>
    %702 = arith.mulf %701, %700 : vector<1x128xf32>
    %703 = arith.addf %699, %702 : vector<1x128xf32>
    %704 = arith.mulf %253, %703 : vector<1x128xf32>
    %cst_156 = arith.constant -1.000000e+00 : f32
    %705 = vector.broadcast %cst_156 : f32 to vector<1x128xf32>
    %706 = arith.mulf %705, %704 : vector<1x128xf32>
    %707 = arith.addf %696, %706 : vector<1x128xf32>
    %708 = arith.mulf %349, %509 : vector<1x128xf32>
    %cst_157 = arith.constant 1.000000e+00 : f32
    %709 = vector.broadcast %cst_157 : f32 to vector<1x128xf32>
    %710 = arith.mulf %709, %708 : vector<1x128xf32>
    %711 = arith.mulf %381, %477 : vector<1x128xf32>
    %cst_158 = arith.constant -1.000000e+00 : f32
    %712 = vector.broadcast %cst_158 : f32 to vector<1x128xf32>
    %713 = arith.mulf %712, %711 : vector<1x128xf32>
    %714 = arith.addf %710, %713 : vector<1x128xf32>
    %715 = arith.mulf %285, %714 : vector<1x128xf32>
    %cst_159 = arith.constant 1.000000e+00 : f32
    %716 = vector.broadcast %cst_159 : f32 to vector<1x128xf32>
    %717 = arith.mulf %716, %715 : vector<1x128xf32>
    %718 = arith.addf %707, %717 : vector<1x128xf32>
    %719 = arith.mulf %189, %718 : vector<1x128xf32>
    %cst_160 = arith.constant -1.000000e+00 : f32
    %720 = vector.broadcast %cst_160 : f32 to vector<1x128xf32>
    %721 = arith.mulf %720, %719 : vector<1x128xf32>
    %722 = arith.addf %686, %721 : vector<1x128xf32>
    %723 = arith.mulf %419, %579 : vector<1x128xf32>
    %cst_161 = arith.constant 1.000000e+00 : f32
    %724 = vector.broadcast %cst_161 : f32 to vector<1x128xf32>
    %725 = arith.mulf %724, %723 : vector<1x128xf32>
    %726 = arith.mulf %451, %547 : vector<1x128xf32>
    %cst_162 = arith.constant -1.000000e+00 : f32
    %727 = vector.broadcast %cst_162 : f32 to vector<1x128xf32>
    %728 = arith.mulf %727, %726 : vector<1x128xf32>
    %729 = arith.addf %725, %728 : vector<1x128xf32>
    %730 = arith.mulf %259, %729 : vector<1x128xf32>
    %cst_163 = arith.constant 1.000000e+00 : f32
    %731 = vector.broadcast %cst_163 : f32 to vector<1x128xf32>
    %732 = arith.mulf %731, %730 : vector<1x128xf32>
    %733 = arith.mulf %387, %579 : vector<1x128xf32>
    %cst_164 = arith.constant 1.000000e+00 : f32
    %734 = vector.broadcast %cst_164 : f32 to vector<1x128xf32>
    %735 = arith.mulf %734, %733 : vector<1x128xf32>
    %736 = arith.mulf %451, %515 : vector<1x128xf32>
    %cst_165 = arith.constant -1.000000e+00 : f32
    %737 = vector.broadcast %cst_165 : f32 to vector<1x128xf32>
    %738 = arith.mulf %737, %736 : vector<1x128xf32>
    %739 = arith.addf %735, %738 : vector<1x128xf32>
    %740 = arith.mulf %291, %739 : vector<1x128xf32>
    %cst_166 = arith.constant -1.000000e+00 : f32
    %741 = vector.broadcast %cst_166 : f32 to vector<1x128xf32>
    %742 = arith.mulf %741, %740 : vector<1x128xf32>
    %743 = arith.addf %732, %742 : vector<1x128xf32>
    %744 = arith.mulf %387, %547 : vector<1x128xf32>
    %cst_167 = arith.constant 1.000000e+00 : f32
    %745 = vector.broadcast %cst_167 : f32 to vector<1x128xf32>
    %746 = arith.mulf %745, %744 : vector<1x128xf32>
    %747 = arith.mulf %419, %515 : vector<1x128xf32>
    %cst_168 = arith.constant -1.000000e+00 : f32
    %748 = vector.broadcast %cst_168 : f32 to vector<1x128xf32>
    %749 = arith.mulf %748, %747 : vector<1x128xf32>
    %750 = arith.addf %746, %749 : vector<1x128xf32>
    %751 = arith.mulf %323, %750 : vector<1x128xf32>
    %cst_169 = arith.constant 1.000000e+00 : f32
    %752 = vector.broadcast %cst_169 : f32 to vector<1x128xf32>
    %753 = arith.mulf %752, %751 : vector<1x128xf32>
    %754 = arith.addf %743, %753 : vector<1x128xf32>
    %755 = arith.mulf %99, %754 : vector<1x128xf32>
    %cst_170 = arith.constant 1.000000e+00 : f32
    %756 = vector.broadcast %cst_170 : f32 to vector<1x128xf32>
    %757 = arith.mulf %756, %755 : vector<1x128xf32>
    %758 = arith.mulf %419, %579 : vector<1x128xf32>
    %cst_171 = arith.constant 1.000000e+00 : f32
    %759 = vector.broadcast %cst_171 : f32 to vector<1x128xf32>
    %760 = arith.mulf %759, %758 : vector<1x128xf32>
    %761 = arith.mulf %451, %547 : vector<1x128xf32>
    %cst_172 = arith.constant -1.000000e+00 : f32
    %762 = vector.broadcast %cst_172 : f32 to vector<1x128xf32>
    %763 = arith.mulf %762, %761 : vector<1x128xf32>
    %764 = arith.addf %760, %763 : vector<1x128xf32>
    %765 = arith.mulf %227, %764 : vector<1x128xf32>
    %cst_173 = arith.constant 1.000000e+00 : f32
    %766 = vector.broadcast %cst_173 : f32 to vector<1x128xf32>
    %767 = arith.mulf %766, %765 : vector<1x128xf32>
    %768 = arith.mulf %355, %579 : vector<1x128xf32>
    %cst_174 = arith.constant 1.000000e+00 : f32
    %769 = vector.broadcast %cst_174 : f32 to vector<1x128xf32>
    %770 = arith.mulf %769, %768 : vector<1x128xf32>
    %771 = arith.mulf %451, %483 : vector<1x128xf32>
    %cst_175 = arith.constant -1.000000e+00 : f32
    %772 = vector.broadcast %cst_175 : f32 to vector<1x128xf32>
    %773 = arith.mulf %772, %771 : vector<1x128xf32>
    %774 = arith.addf %770, %773 : vector<1x128xf32>
    %775 = arith.mulf %291, %774 : vector<1x128xf32>
    %cst_176 = arith.constant -1.000000e+00 : f32
    %776 = vector.broadcast %cst_176 : f32 to vector<1x128xf32>
    %777 = arith.mulf %776, %775 : vector<1x128xf32>
    %778 = arith.addf %767, %777 : vector<1x128xf32>
    %779 = arith.mulf %355, %547 : vector<1x128xf32>
    %cst_177 = arith.constant 1.000000e+00 : f32
    %780 = vector.broadcast %cst_177 : f32 to vector<1x128xf32>
    %781 = arith.mulf %780, %779 : vector<1x128xf32>
    %782 = arith.mulf %419, %483 : vector<1x128xf32>
    %cst_178 = arith.constant -1.000000e+00 : f32
    %783 = vector.broadcast %cst_178 : f32 to vector<1x128xf32>
    %784 = arith.mulf %783, %782 : vector<1x128xf32>
    %785 = arith.addf %781, %784 : vector<1x128xf32>
    %786 = arith.mulf %323, %785 : vector<1x128xf32>
    %cst_179 = arith.constant 1.000000e+00 : f32
    %787 = vector.broadcast %cst_179 : f32 to vector<1x128xf32>
    %788 = arith.mulf %787, %786 : vector<1x128xf32>
    %789 = arith.addf %778, %788 : vector<1x128xf32>
    %790 = arith.mulf %131, %789 : vector<1x128xf32>
    %cst_180 = arith.constant -1.000000e+00 : f32
    %791 = vector.broadcast %cst_180 : f32 to vector<1x128xf32>
    %792 = arith.mulf %791, %790 : vector<1x128xf32>
    %793 = arith.addf %757, %792 : vector<1x128xf32>
    %794 = arith.mulf %387, %579 : vector<1x128xf32>
    %cst_181 = arith.constant 1.000000e+00 : f32
    %795 = vector.broadcast %cst_181 : f32 to vector<1x128xf32>
    %796 = arith.mulf %795, %794 : vector<1x128xf32>
    %797 = arith.mulf %451, %515 : vector<1x128xf32>
    %cst_182 = arith.constant -1.000000e+00 : f32
    %798 = vector.broadcast %cst_182 : f32 to vector<1x128xf32>
    %799 = arith.mulf %798, %797 : vector<1x128xf32>
    %800 = arith.addf %796, %799 : vector<1x128xf32>
    %801 = arith.mulf %227, %800 : vector<1x128xf32>
    %cst_183 = arith.constant 1.000000e+00 : f32
    %802 = vector.broadcast %cst_183 : f32 to vector<1x128xf32>
    %803 = arith.mulf %802, %801 : vector<1x128xf32>
    %804 = arith.mulf %355, %579 : vector<1x128xf32>
    %cst_184 = arith.constant 1.000000e+00 : f32
    %805 = vector.broadcast %cst_184 : f32 to vector<1x128xf32>
    %806 = arith.mulf %805, %804 : vector<1x128xf32>
    %807 = arith.mulf %451, %483 : vector<1x128xf32>
    %cst_185 = arith.constant -1.000000e+00 : f32
    %808 = vector.broadcast %cst_185 : f32 to vector<1x128xf32>
    %809 = arith.mulf %808, %807 : vector<1x128xf32>
    %810 = arith.addf %806, %809 : vector<1x128xf32>
    %811 = arith.mulf %259, %810 : vector<1x128xf32>
    %cst_186 = arith.constant -1.000000e+00 : f32
    %812 = vector.broadcast %cst_186 : f32 to vector<1x128xf32>
    %813 = arith.mulf %812, %811 : vector<1x128xf32>
    %814 = arith.addf %803, %813 : vector<1x128xf32>
    %815 = arith.mulf %355, %515 : vector<1x128xf32>
    %cst_187 = arith.constant 1.000000e+00 : f32
    %816 = vector.broadcast %cst_187 : f32 to vector<1x128xf32>
    %817 = arith.mulf %816, %815 : vector<1x128xf32>
    %818 = arith.mulf %387, %483 : vector<1x128xf32>
    %cst_188 = arith.constant -1.000000e+00 : f32
    %819 = vector.broadcast %cst_188 : f32 to vector<1x128xf32>
    %820 = arith.mulf %819, %818 : vector<1x128xf32>
    %821 = arith.addf %817, %820 : vector<1x128xf32>
    %822 = arith.mulf %323, %821 : vector<1x128xf32>
    %cst_189 = arith.constant 1.000000e+00 : f32
    %823 = vector.broadcast %cst_189 : f32 to vector<1x128xf32>
    %824 = arith.mulf %823, %822 : vector<1x128xf32>
    %825 = arith.addf %814, %824 : vector<1x128xf32>
    %826 = arith.mulf %163, %825 : vector<1x128xf32>
    %cst_190 = arith.constant 1.000000e+00 : f32
    %827 = vector.broadcast %cst_190 : f32 to vector<1x128xf32>
    %828 = arith.mulf %827, %826 : vector<1x128xf32>
    %829 = arith.addf %793, %828 : vector<1x128xf32>
    %830 = arith.mulf %387, %547 : vector<1x128xf32>
    %cst_191 = arith.constant 1.000000e+00 : f32
    %831 = vector.broadcast %cst_191 : f32 to vector<1x128xf32>
    %832 = arith.mulf %831, %830 : vector<1x128xf32>
    %833 = arith.mulf %419, %515 : vector<1x128xf32>
    %cst_192 = arith.constant -1.000000e+00 : f32
    %834 = vector.broadcast %cst_192 : f32 to vector<1x128xf32>
    %835 = arith.mulf %834, %833 : vector<1x128xf32>
    %836 = arith.addf %832, %835 : vector<1x128xf32>
    %837 = arith.mulf %227, %836 : vector<1x128xf32>
    %cst_193 = arith.constant 1.000000e+00 : f32
    %838 = vector.broadcast %cst_193 : f32 to vector<1x128xf32>
    %839 = arith.mulf %838, %837 : vector<1x128xf32>
    %840 = arith.mulf %355, %547 : vector<1x128xf32>
    %cst_194 = arith.constant 1.000000e+00 : f32
    %841 = vector.broadcast %cst_194 : f32 to vector<1x128xf32>
    %842 = arith.mulf %841, %840 : vector<1x128xf32>
    %843 = arith.mulf %419, %483 : vector<1x128xf32>
    %cst_195 = arith.constant -1.000000e+00 : f32
    %844 = vector.broadcast %cst_195 : f32 to vector<1x128xf32>
    %845 = arith.mulf %844, %843 : vector<1x128xf32>
    %846 = arith.addf %842, %845 : vector<1x128xf32>
    %847 = arith.mulf %259, %846 : vector<1x128xf32>
    %cst_196 = arith.constant -1.000000e+00 : f32
    %848 = vector.broadcast %cst_196 : f32 to vector<1x128xf32>
    %849 = arith.mulf %848, %847 : vector<1x128xf32>
    %850 = arith.addf %839, %849 : vector<1x128xf32>
    %851 = arith.mulf %355, %515 : vector<1x128xf32>
    %cst_197 = arith.constant 1.000000e+00 : f32
    %852 = vector.broadcast %cst_197 : f32 to vector<1x128xf32>
    %853 = arith.mulf %852, %851 : vector<1x128xf32>
    %854 = arith.mulf %387, %483 : vector<1x128xf32>
    %cst_198 = arith.constant -1.000000e+00 : f32
    %855 = vector.broadcast %cst_198 : f32 to vector<1x128xf32>
    %856 = arith.mulf %855, %854 : vector<1x128xf32>
    %857 = arith.addf %853, %856 : vector<1x128xf32>
    %858 = arith.mulf %291, %857 : vector<1x128xf32>
    %cst_199 = arith.constant 1.000000e+00 : f32
    %859 = vector.broadcast %cst_199 : f32 to vector<1x128xf32>
    %860 = arith.mulf %859, %858 : vector<1x128xf32>
    %861 = arith.addf %850, %860 : vector<1x128xf32>
    %862 = arith.mulf %195, %861 : vector<1x128xf32>
    %cst_200 = arith.constant -1.000000e+00 : f32
    %863 = vector.broadcast %cst_200 : f32 to vector<1x128xf32>
    %864 = arith.mulf %863, %862 : vector<1x128xf32>
    %865 = arith.addf %829, %864 : vector<1x128xf32>
    %c128_i32 = arith.constant 128 : i32
    %866 = arith.muli %arg0, %c128_i32 : i32
    %867 = tpu.iota {dimensions = array<i32: 1>} : vector<1x128xi32>
    %868 = vector.broadcast %866 : i32 to vector<1x128xi32>
    %869 = arith.addi %868, %867 : vector<1x128xi32>
    %c2_i32 = arith.constant 2 : i32
    %870 = vector.broadcast %c2_i32 : i32 to vector<1x128xi32>
    %871 = arith.cmpi slt, %869, %870 : vector<1x128xi32>
    %872 = math.absf %722 : vector<1x128xf32>
    %873 = math.log %872 : vector<1x128xf32>
    %cst_201 = arith.constant 2.000000e+00 : f32
    %874 = math.log %cst_201 : f32
    %875 = vector.broadcast %874 : f32 to vector<1x128xf32>
    %876 = arith.divf %873, %875 : vector<1x128xf32>
    %cst_202 = arith.constant 0.000000e+00 : f32
    %877 = vector.broadcast %cst_202 : f32 to vector<1x128xf32>
    %878 = arith.subf %877, %876 : vector<1x128xf32>
    %cst_203 = arith.constant 0.000000e+00 : f32
    %879 = vector.broadcast %cst_203 : f32 to vector<1x128xf32>
    %880 = arith.select %871, %878, %879 : vector<1x128xi1>, vector<1x128xf32>
    %881 = math.absf %865 : vector<1x128xf32>
    %882 = math.log %881 : vector<1x128xf32>
    %cst_204 = arith.constant 2.000000e+00 : f32
    %883 = math.log %cst_204 : f32
    %884 = vector.broadcast %883 : f32 to vector<1x128xf32>
    %885 = arith.divf %882, %884 : vector<1x128xf32>
    %cst_205 = arith.constant 0.000000e+00 : f32
    %886 = vector.broadcast %cst_205 : f32 to vector<1x128xf32>
    %887 = arith.subf %886, %885 : vector<1x128xf32>
    %cst_206 = arith.constant 0.000000e+00 : f32
    %888 = vector.broadcast %cst_206 : f32 to vector<1x128xf32>
    %889 = arith.select %871, %887, %888 : vector<1x128xi1>, vector<1x128xf32>
    %890 = vector.shape_cast %880 : vector<1x128xf32> to vector<1x1x128xf32>
    %cst_207 = arith.constant dense<0.000000e+00> : vector<1xf32>
    %891 = vector.multi_reduction <add>, %890, %cst_207 [1, 2] : vector<1x1x128xf32> to vector<1xf32>
    %892 = vector.shape_cast %891 : vector<1xf32> to vector<1x1x1xf32>
    %893 = vector.extract %892[0, 0, 0] : f32 from vector<1x1x1xf32>
    %894 = vector.shape_cast %889 : vector<1x128xf32> to vector<1x1x128xf32>
    %cst_208 = arith.constant dense<0.000000e+00> : vector<1xf32>
    %895 = vector.multi_reduction <add>, %894, %cst_208 [1, 2] : vector<1x1x128xf32> to vector<1xf32>
    %896 = vector.shape_cast %895 : vector<1xf32> to vector<1x1x1xf32>
    %897 = vector.extract %896[0, 0, 0] : f32 from vector<1x1x1xf32>
    %cst_209 = arith.constant 0.000000e+00 : f32
    %898 = vector.broadcast %cst_209 : f32 to vector<1x8x128xf32>
    %899 = vector.broadcast %893 : f32 to vector<1x8x128xf32>
    %900 = arith.addf %898, %899 : vector<1x8x128xf32>
    %c0_210 = arith.constant 0 : index
    %c0_211 = arith.constant 0 : index
    %c0_212 = arith.constant 0 : index
    %901 = vector.load %arg2[%c0_210, %c0_211, %c0_212] : memref<1x8x128xf32, #tpu.memory_space<vmem>>, vector<1x8x128xf32>
    tpu.vector_store %arg2[%c0_210, %c0_211, %c0_212], %900 {strides = array<i32>} : memref<1x8x128xf32, #tpu.memory_space<vmem>>, vector<1x8x128xf32>,
    %cst_213 = arith.constant 0.000000e+00 : f32
    %902 = vector.broadcast %cst_213 : f32 to vector<1x8x128xf32>
    %903 = vector.broadcast %897 : f32 to vector<1x8x128xf32>
    %904 = arith.addf %902, %903 : vector<1x8x128xf32>
    %c0_214 = arith.constant 0 : index
    %c0_215 = arith.constant 0 : index
    %c0_216 = arith.constant 0 : index
    %905 = vector.load %arg3[%c0_214, %c0_215, %c0_216] : memref<1x8x128xf32, #tpu.memory_space<vmem>>, vector<1x8x128xf32>
    tpu.vector_store %arg3[%c0_214, %c0_215, %c0_216], %904 {strides = array<i32>} : memref<1x8x128xf32, #tpu.memory_space<vmem>>, vector<1x8x128xf32>,
    return
  }
  func.func @transform_0(%arg0: i32) -> (i32, i32) {
    %c0_i32 = arith.constant 0 : i32
    %c0_i32_0 = arith.constant 0 : i32
    return %c0_i32, %arg0 : i32, i32
  }
  func.func @transform_1(%arg0: i32) -> (i32, i32, i32) {
    %c0_i32 = arith.constant 0 : i32
    %c0_i32_0 = arith.constant 0 : i32
    %c0_i32_1 = arith.constant 0 : i32
    return %arg0, %c0_i32, %c0_i32_0 : i32, i32, i32
  }
  func.func @transform_2(%arg0: i32) -> (i32, i32, i32) {
    %c0_i32 = arith.constant 0 : i32
    %c0_i32_0 = arith.constant 0 : i32
    %c0_i32_1 = arith.constant 0 : i32
    return %arg0, %c0_i32, %c0_i32_0 : i32, i32, i32
  }
}

</mosaic_0001>

<llo_original>
// kernel: tpu_custom_call.1
$region0: #{tpu_custom_call.1}
  #allocation0 [shape = 'u32[]', space=smem, size = 0x4, offset = 0x4, fixed_abs, tag = 'smem constant byte address 0x4 - core index']
  #allocation1 [shape = 'u32[144,128]{1,0:T(1,128)}', space=vmem, size = 0x12000, scoped, tag = 'internal scratch']
  %s0 = inlined_call_operand.hbm [shape: f32[256,128], index: 0, kind: input, shape index: {}]
  %s1 = inlined_call_operand.hbm [shape: f32[1,8,128], index: 1, kind: output, shape index: {0}]
  %s2 = inlined_call_operand.hbm [shape: f32[1,8,128], index: 2, kind: output, shape index: {1}]
  %3 = xla_tuple %s1, %s2
  %s4 = sld [smem:[#allocation0]]
  $region26: #{tpu_custom_call.1} parent=0
    _
  %s6 = ssub.s32 1, %s4
  %s7 = scalar_select 0, %s6, %s4
  $region1: #{tpu_custom_call.1} parent=0
    #allocation2 [shape = 'u8[131072]{0}', space=vmem, size = 0x20000, scoped, tag = 'input window, operand 0, single buffered']
    #allocation3 [shape = 's32[1]{0}', space=sflag, size = 0x4, scoped, tag = 'scoped memory for tpu_custom_call.1']
    #allocation4 [shape = 's32[1]{0}', space=sflag, size = 0x4, scoped, tag = 'scoped memory for tpu_custom_call.1']
    #allocation5 [shape = 'u8[4096]{0}', space=vmem, size = 0x1000, scoped, tag = 'output window, operand 0, single buffered']
    #allocation6 [shape = 'u8[4096]{0}', space=vmem, size = 0x1000, scoped, tag = 'output window, operand 1, single buffered']
    #allocation7 [shape = 's32[1]{0}', space=sflag, size = 0x4, scoped, tag = 'scoped memory for tpu_custom_call.1']
    %8 = vsyncpa [#allocation3], 0
    %9 = vsyncpa [#allocation4], 0
    %10 = vsyncpa [#allocation7], 0
    // Predicated region
    $region2: #{tpu_custom_call.1} parent=1 // pred_check
      _
    $region3: #{tpu_custom_call.1} parent=1 // pred_check_branch
      %12 = sbr.rel (0) target = $region5
    $region4: #{tpu_custom_call.1} parent=1 // pred_region
      %s14 = ssub.s32 4096, 4096
      %15 = vsyncadd [#allocation3], %s14
      %s16 = sshll.u32 [#allocation2], 4
      %s17 = int_to_ptr.vmem [resolvable:$true] %s16
      %22 = dma.hbm_to_vmem [thread:$0]  %s0, 4096, %s17, [#allocation3], 128, 128, 8
    $region5: #{tpu_custom_call.1} parent=1 // pred_fallthru
      _
    // Predicated region
    $region6: #{tpu_custom_call.1} parent=1 // pred_check
      _
    $region7: #{tpu_custom_call.1} parent=1 // pred_check_branch
      %24 = sbr.rel (0) target = $region9
    $region8: #{tpu_custom_call.1} parent=1 // pred_region
      %25 = dma.done [#allocation3], 4096
    $region9: #{tpu_custom_call.1} parent=1 // pred_fallthru
      _
    %v26 = vld [vmem:[#allocation2] sm:$0xff]
    %v27 = vld [vmem:[#allocation2 + $0x8] sm:$0xff]
    %v28 = vld [vmem:[#allocation2 + $0x10] sm:$0xff]
    %v29 = vld [vmem:[#allocation2 + $0x18] sm:$0xff]
    %v30 = vld [vmem:[#allocation2 + $0x20] sm:$0xff]
    %v31 = vld [vmem:[#allocation2 + $0x28] sm:$0xff]
    %v32 = vld [vmem:[#allocation2 + $0x30] sm:$0xff]
    %v33 = vld [vmem:[#allocation2 + $0x38] sm:$0xff]
    %v34 = vld [vmem:[#allocation2 + $0x40] sm:$0xff]
    %v35 = vld [vmem:[#allocation2 + $0x48] sm:$0xff]
    %v36 = vld [vmem:[#allocation2 + $0x50] sm:$0xff]
    %v37 = vld [vmem:[#allocation2 + $0x58] sm:$0xff]
    %v38 = vld [vmem:[#allocation2 + $0x60] sm:$0xff]
    %v39 = vld [vmem:[#allocation2 + $0x68] sm:$0xff]
    %v40 = vld [vmem:[#allocation2 + $0x70] sm:$0xff]
    %v41 = vld [vmem:[#allocation2 + $0x78] sm:$0xff]
    %v42 = vld [vmem:[#allocation2 + $0x80] sm:$0xff]
    %v43 = vld [vmem:[#allocation2 + $0x88] sm:$0xff]
    %v44 = vld [vmem:[#allocation2 + $0x90] sm:$0xff]
    %v45 = vld [vmem:[#allocation2 + $0x98] sm:$0xff]
    %v46 = vld [vmem:[#allocation2 + $0xa0] sm:$0xff]
    %v47 = vld [vmem:[#allocation2 + $0xa8] sm:$0xff]
    %v48 = vld [vmem:[#allocation2 + $0xb0] sm:$0xff]
    %v49 = vld [vmem:[#allocation2 + $0xb8] sm:$0xff]
    %v50 = vld [vmem:[#allocation2 + $0xc0] sm:$0xff]
    %v51 = vld [vmem:[#allocation2 + $0xc8] sm:$0xff]
    %v52 = vld [vmem:[#allocation2 + $0xd0] sm:$0xff]
    %v53 = vld [vmem:[#allocation2 + $0xd8] sm:$0xff]
    %v54 = vld [vmem:[#allocation2 + $0xe0] sm:$0xff]
    %v55 = vld [vmem:[#allocation2 + $0xe8] sm:$0xff]
    %v56 = vld [vmem:[#allocation2 + $0xf0] sm:$0xff]
    %v57 = vld [vmem:[#allocation2 + $0xf8] sm:$0xff]
    %v58 = vmul.f32 %v26, %v26
    %v59 = vmul.f32 %v27, %v27
    %v60 = vmul.f32 %v34, %v34
    %v61 = vmul.f32 %v35, %v35
    %v62 = vadd.f32 %v58, %v60
    %v63 = vadd.f32 %v59, %v61
    %v64 = vadd.f32 %v62, %v63
    %v65 = vrot.slane %v64, 4
    %v66 = vadd.f32 %v64, %v65
    %v67 = vrot.slane %v66, 2
    %v68 = vadd.f32 %v66, %v67
    %v69 = vrot.slane %v68, 1
    %v70 = vadd.f32 %v68, %v69
    %v71 = vmul.f32 %v28, %v28
    %v72 = vmul.f32 %v29, %v29
    %v73 = vmul.f32 %v36, %v36
    %v74 = vmul.f32 %v37, %v37
    %v75 = vadd.f32 %v71, %v73
    %v76 = vadd.f32 %v72, %v74
    %v77 = vadd.f32 %v75, %v76
    %v78 = vrot.slane %v77, 4
    %v79 = vadd.f32 %v77, %v78
    %v80 = vrot.slane %v79, 2
    %v81 = vadd.f32 %v79, %v80
    %v82 = vrot.slane %v81, 1
    %v83 = vadd.f32 %v81, %v82
    %v84 = vadd.f32 %v70, %v83
    %v85 = vmul.f32 %v30, %v30
    %v86 = vmul.f32 %v31, %v31
    %v87 = vmul.f32 %v38, %v38
    %v88 = vmul.f32 %v39, %v39
    %v89 = vadd.f32 %v85, %v87
    %v90 = vadd.f32 %v86, %v88
    %v91 = vadd.f32 %v89, %v90
    %v92 = vrot.slane %v91, 4
    %v93 = vadd.f32 %v91, %v92
    %v94 = vrot.slane %v93, 2
    %v95 = vadd.f32 %v93, %v94
    %v96 = vrot.slane %v95, 1
    %v97 = vadd.f32 %v95, %v96
    %v98 = vadd.f32 %v84, %v97
    %v99 = vmul.f32 %v32, %v32
    %v100 = vmul.f32 %v33, %v33
    %v101 = vmul.f32 %v40, %v40
    %v102 = vmul.f32 %v41, %v41
    %v103 = vadd.f32 %v99, %v101
    %v104 = vadd.f32 %v100, %v102
    %v105 = vadd.f32 %v103, %v104
    %v106 = vrot.slane %v105, 4
    %v107 = vadd.f32 %v105, %v106
    %v108 = vrot.slane %v107, 2
    %v109 = vadd.f32 %v107, %v108
    %v110 = vrot.slane %v109, 1
    %v111 = vadd.f32 %v109, %v110
    %v112 = vadd.f32 %v98, %v111
    %v113 = vmul.f32 %v42, %v42
    %v114 = vmul.f32 %v43, %v43
    %v115 = vmul.f32 %v50, %v50
    %v116 = vmul.f32 %v51, %v51
    %v117 = vadd.f32 %v113, %v115
    %v118 = vadd.f32 %v114, %v116
    %v119 = vadd.f32 %v117, %v118
    %v120 = vrot.slane %v119, 4
    %v121 = vadd.f32 %v119, %v120
    %v122 = vrot.slane %v121, 2
    %v123 = vadd.f32 %v121, %v122
    %v124 = vrot.slane %v123, 1
    %v125 = vadd.f32 %v123, %v124
    %v126 = vmul.f32 %v44, %v44
    %v127 = vmul.f32 %v45, %v45
    %v128 = vmul.f32 %v52, %v52
    %v129 = vmul.f32 %v53, %v53
    %v130 = vadd.f32 %v126, %v128
    %v131 = vadd.f32 %v127, %v129
    %v132 = vadd.f32 %v130, %v131
    %v133 = vrot.slane %v132, 4
    %v134 = vadd.f32 %v132, %v133
    %v135 = vrot.slane %v134, 2
    %v136 = vadd.f32 %v134, %v135
    %v137 = vrot.slane %v136, 1
    %v138 = vadd.f32 %v136, %v137
    %v139 = vadd.f32 %v125, %v138
    %v140 = vmul.f32 %v46, %v46
    %v141 = vmul.f32 %v47, %v47
    %v142 = vmul.f32 %v54, %v54
    %v143 = vmul.f32 %v55, %v55
    %v144 = vadd.f32 %v140, %v142
    %v145 = vadd.f32 %v141, %v143
    %v146 = vadd.f32 %v144, %v145
    %v147 = vrot.slane %v146, 4
    %v148 = vadd.f32 %v146, %v147
    %v149 = vrot.slane %v148, 2
    %v150 = vadd.f32 %v148, %v149
    %v151 = vrot.slane %v150, 1
    %v152 = vadd.f32 %v150, %v151
    %v153 = vadd.f32 %v139, %v152
    %v154 = vmul.f32 %v48, %v48
    %v155 = vmul.f32 %v49, %v49
    %v156 = vmul.f32 %v56, %v56
    %v157 = vmul.f32 %v57, %v57
    %v158 = vadd.f32 %v154, %v156
    %v159 = vadd.f32 %v155, %v157
    %v160 = vadd.f32 %v158, %v159
    %v161 = vrot.slane %v160, 4
    %v162 = vadd.f32 %v160, %v161
    %v163 = vrot.slane %v162, 2
    %v164 = vadd.f32 %v162, %v163
    %v165 = vrot.slane %v164, 1
    %v166 = vadd.f32 %v164, %v165
    %v167 = vadd.f32 %v153, %v166
    %v168 = vmul.f32 %v167, %v112
    %v169 = vrcp.pop %v168
    %v170 = vmul.f32 640.0, %v169
    %v171 = vmul.f32 %v167, %v167
    %v172 = vrcp.pop %v171
    %v173 = vmul.f32 640.0, %v172
    %v174 = vmul.f32 %v26, %v42
    %v175 = vmul.f32 %v27, %v43
    %v176 = vmul.f32 %v34, %v50
    %v177 = vmul.f32 %v35, %v51
    %v178 = vadd.f32 %v174, %v176
    %v179 = vadd.f32 %v175, %v177
    %v180 = vadd.f32 %v178, %v179
    %v181 = vrot.slane %v180, 4
    %v182 = vadd.f32 %v180, %v181
    %v183 = vrot.slane %v182, 2
    %v184 = vadd.f32 %v182, %v183
    %v185 = vrot.slane %v184, 1
    %v186 = vadd.f32 %v184, %v185
    %v187 = vmul.f32 %v26, %v50
    %v188 = vmul.f32 %v27, %v51
    %v189 = vmul.f32 %v34, %v42
    %v190 = vmul.f32 %v35, %v43
    %v191 = vsub.f32 %v187, %v189
    %v192 = vsub.f32 %v188, %v190
    %v193 = vadd.f32 %v191, %v192
    %v194 = vrot.slane %v193, 4
    %v195 = vadd.f32 %v193, %v194
    %v196 = vrot.slane %v195, 2
    %v197 = vadd.f32 %v195, %v196
    %v198 = vrot.slane %v197, 1
    %v199 = vadd.f32 %v197, %v198
    %v200 = vmul.f32 %v42, %v50
    %v201 = vmul.f32 %v43, %v51
    %v202 = vsub.f32 %v200, %v200
    %v203 = vsub.f32 %v201, %v201
    %v204 = vadd.f32 %v202, %v203
    %v205 = vrot.slane %v204, 4
    %v206 = vadd.f32 %v204, %v205
    %v207 = vrot.slane %v206, 2
    %v208 = vadd.f32 %v206, %v207
    %v209 = vrot.slane %v208, 1
    %v210 = vadd.f32 %v208, %v209
    %v211 = vmul.f32 %v186, %v186
    %v212 = vmul.f32 %v199, %v199
    %v213 = vadd.f32 %v211, %v212
    %v214 = vmul.f32 %v213, %v170
    %v215 = vadd.f32 %v214, 1.0
    %v216 = vmul.f32 %v125, %v125
    %v217 = vmul.f32 %v210, %v210
    %v218 = vadd.f32 %v216, %v217
    %v219 = vmul.f32 %v218, %v173
    %v220 = vadd.f32 %v219, 1.0
    %v221 = vmul.f32 %v26, %v44
    %v222 = vmul.f32 %v27, %v45
    %v223 = vmul.f32 %v34, %v52
    %v224 = vmul.f32 %v35, %v53
    %v225 = vadd.f32 %v221, %v223
    %v226 = vadd.f32 %v222, %v224
    %v227 = vadd.f32 %v225, %v226
    %v228 = vrot.slane %v227, 4
    %v229 = vadd.f32 %v227, %v228
    %v230 = vrot.slane %v229, 2
    %v231 = vadd.f32 %v229, %v230
    %v232 = vrot.slane %v231, 1
    %v233 = vadd.f32 %v231, %v232
    %v234 = vmul.f32 %v26, %v52
    %v235 = vmul.f32 %v27, %v53
    %v236 = vmul.f32 %v34, %v44
    %v237 = vmul.f32 %v35, %v45
    %v238 = vsub.f32 %v234, %v236
    %v239 = vsub.f32 %v235, %v237
    %v240 = vadd.f32 %v238, %v239
    %v241 = vrot.slane %v240, 4
    %v242 = vadd.f32 %v240, %v241
    %v243 = vrot.slane %v242, 2
    %v244 = vadd.f32 %v242, %v243
    %v245 = vrot.slane %v244, 1
    %v246 = vadd.f32 %v244, %v245
    %v247 = vmul.f32 %v42, %v44
    %v248 = vmul.f32 %v43, %v45
    %v249 = vmul.f32 %v50, %v52
    %v250 = vmul.f32 %v51, %v53
    %v251 = vadd.f32 %v247, %v249
    %v252 = vadd.f32 %v248, %v250
    %v253 = vadd.f32 %v251, %v252
    %v254 = vrot.slane %v253, 4
    %v255 = vadd.f32 %v253, %v254
    %v256 = vrot.slane %v255, 2
    %v257 = vadd.f32 %v255, %v256
    %v258 = vrot.slane %v257, 1
    %v259 = vadd.f32 %v257, %v258
    %v260 = vmul.f32 %v42, %v52
    %v261 = vmul.f32 %v43, %v53
    %v262 = vmul.f32 %v50, %v44
    %v263 = vmul.f32 %v51, %v45
    %v264 = vsub.f32 %v260, %v262
    %v265 = vsub.f32 %v261, %v263
    %v266 = vadd.f32 %v264, %v265
    %v267 = vrot.slane %v266, 4
    %v268 = vadd.f32 %v266, %v267
    %v269 = vrot.slane %v268, 2
    %v270 = vadd.f32 %v268, %v269
    %v271 = vrot.slane %v270, 1
    %v272 = vadd.f32 %v270, %v271
    %v273 = vmul.f32 %v233, %v233
    %v274 = vmul.f32 %v246, %v246
    %v275 = vadd.f32 %v273, %v274
    %v276 = vmul.f32 %v275, %v170
    %v277 = vadd.f32 %v276, 0.0
    %v278 = vmul.f32 %v259, %v259
    %v279 = vmul.f32 %v272, %v272
    %v280 = vadd.f32 %v278, %v279
    %v281 = vmul.f32 %v280, %v173
    %v282 = vadd.f32 %v281, 0.0
    %v283 = vmul.f32 %v26, %v46
    %v284 = vmul.f32 %v27, %v47
    %v285 = vmul.f32 %v34, %v54
    %v286 = vmul.f32 %v35, %v55
    %v287 = vadd.f32 %v283, %v285
    %v288 = vadd.f32 %v284, %v286
    %v289 = vadd.f32 %v287, %v288
    %v290 = vrot.slane %v289, 4
    %v291 = vadd.f32 %v289, %v290
    %v292 = vrot.slane %v291, 2
    %v293 = vadd.f32 %v291, %v292
    %v294 = vrot.slane %v293, 1
    %v295 = vadd.f32 %v293, %v294
    %v296 = vmul.f32 %v26, %v54
    %v297 = vmul.f32 %v27, %v55
    %v298 = vmul.f32 %v34, %v46
    %v299 = vmul.f32 %v35, %v47
    %v300 = vsub.f32 %v296, %v298
    %v301 = vsub.f32 %v297, %v299
    %v302 = vadd.f32 %v300, %v301
    %v303 = vrot.slane %v302, 4
    %v304 = vadd.f32 %v302, %v303
    %v305 = vrot.slane %v304, 2
    %v306 = vadd.f32 %v304, %v305
    %v307 = vrot.slane %v306, 1
    %v308 = vadd.f32 %v306, %v307
    %v309 = vmul.f32 %v42, %v46
    %v310 = vmul.f32 %v43, %v47
    %v311 = vmul.f32 %v50, %v54
    %v312 = vmul.f32 %v51, %v55
    %v313 = vadd.f32 %v309, %v311
    %v314 = vadd.f32 %v310, %v312
    %v315 = vadd.f32 %v313, %v314
    %v316 = vrot.slane %v315, 4
    %v317 = vadd.f32 %v315, %v316
    %v318 = vrot.slane %v317, 2
    %v319 = vadd.f32 %v317, %v318
    %v320 = vrot.slane %v319, 1
    %v321 = vadd.f32 %v319, %v320
    %v322 = vmul.f32 %v42, %v54
    %v323 = vmul.f32 %v43, %v55
    %v324 = vmul.f32 %v50, %v46
    %v325 = vmul.f32 %v51, %v47
    %v326 = vsub.f32 %v322, %v324
    %v327 = vsub.f32 %v323, %v325
    %v328 = vadd.f32 %v326, %v327
    %v329 = vrot.slane %v328, 4
    %v330 = vadd.f32 %v328, %v329
    %v331 = vrot.slane %v330, 2
    %v332 = vadd.f32 %v330, %v331
    %v333 = vrot.slane %v332, 1
    %v334 = vadd.f32 %v332, %v333
    %v335 = vmul.f32 %v295, %v295
    %v336 = vmul.f32 %v308, %v308
    %v337 = vadd.f32 %v335, %v336
    %v338 = vmul.f32 %v337, %v170
    %v339 = vadd.f32 %v338, 0.0
    %v340 = vmul.f32 %v321, %v321
    %v341 = vmul.f32 %v334, %v334
    %v342 = vadd.f32 %v340, %v341
    %v343 = vmul.f32 %v342, %v173
    %v344 = vadd.f32 %v343, 0.0
    %v345 = vmul.f32 %v26, %v48
    %v346 = vmul.f32 %v27, %v49
    %v347 = vmul.f32 %v34, %v56
    %v348 = vmul.f32 %v35, %v57
    %v349 = vadd.f32 %v345, %v347
    %v350 = vadd.f32 %v346, %v348
    %v351 = vadd.f32 %v349, %v350
    %v352 = vrot.slane %v351, 4
    %v353 = vadd.f32 %v351, %v352
    %v354 = vrot.slane %v353, 2
    %v355 = vadd.f32 %v353, %v354
    %v356 = vrot.slane %v355, 1
    %v357 = vadd.f32 %v355, %v356
    %v358 = vmul.f32 %v26, %v56
    %v359 = vmul.f32 %v27, %v57
    %v360 = vmul.f32 %v34, %v48
    %v361 = vmul.f32 %v35, %v49
    %v362 = vsub.f32 %v358, %v360
    %v363 = vsub.f32 %v359, %v361
    %v364 = vadd.f32 %v362, %v363
    %v365 = vrot.slane %v364, 4
    %v366 = vadd.f32 %v364, %v365
    %v367 = vrot.slane %v366, 2
    %v368 = vadd.f32 %v366, %v367
    %v369 = vrot.slane %v368, 1
    %v370 = vadd.f32 %v368, %v369
    %v371 = vmul.f32 %v42, %v48
    %v372 = vmul.f32 %v43, %v49
    %v373 = vmul.f32 %v50, %v56
    %v374 = vmul.f32 %v51, %v57
    %v375 = vadd.f32 %v371, %v373
    %v376 = vadd.f32 %v372, %v374
    %v377 = vadd.f32 %v375, %v376
    %v378 = vrot.slane %v377, 4
    %v379 = vadd.f32 %v377, %v378
    %v380 = vrot.slane %v379, 2
    %v381 = vadd.f32 %v379, %v380
    %v382 = vrot.slane %v381, 1
    %v383 = vadd.f32 %v381, %v382
    %v384 = vmul.f32 %v42, %v56
    %v385 = vmul.f32 %v43, %v57
    %v386 = vmul.f32 %v50, %v48
    %v387 = vmul.f32 %v51, %v49
    %v388 = vsub.f32 %v384, %v386
    %v389 = vsub.f32 %v385, %v387
    %v390 = vadd.f32 %v388, %v389
    %v391 = vrot.slane %v390, 4
    %v392 = vadd.f32 %v390, %v391
    %v393 = vrot.slane %v392, 2
    %v394 = vadd.f32 %v392, %v393
    %v395 = vrot.slane %v394, 1
    %v396 = vadd.f32 %v394, %v395
    %v397 = vmul.f32 %v357, %v357
    %v398 = vmul.f32 %v370, %v370
    %v399 = vadd.f32 %v397, %v398
    %v400 = vmul.f32 %v399, %v170
    %v401 = vadd.f32 %v400, 0.0
    %v402 = vmul.f32 %v383, %v383
    %v403 = vmul.f32 %v396, %v396
    %v404 = vadd.f32 %v402, %v403
    %v405 = vmul.f32 %v404, %v173
    %v406 = vadd.f32 %v405, 0.0
    %v407 = vmul.f32 %v28, %v42
    %v408 = vmul.f32 %v29, %v43
    %v409 = vmul.f32 %v36, %v50
    %v410 = vmul.f32 %v37, %v51
    %v411 = vadd.f32 %v407, %v409
    %v412 = vadd.f32 %v408, %v410
    %v413 = vadd.f32 %v411, %v412
    %v414 = vrot.slane %v413, 4
    %v415 = vadd.f32 %v413, %v414
    %v416 = vrot.slane %v415, 2
    %v417 = vadd.f32 %v415, %v416
    %v418 = vrot.slane %v417, 1
    %v419 = vadd.f32 %v417, %v418
    %v420 = vmul.f32 %v28, %v50
    %v421 = vmul.f32 %v29, %v51
    %v422 = vmul.f32 %v36, %v42
    %v423 = vmul.f32 %v37, %v43
    %v424 = vsub.f32 %v420, %v422
    %v425 = vsub.f32 %v421, %v423
    %v426 = vadd.f32 %v424, %v425
    %v427 = vrot.slane %v426, 4
    %v428 = vadd.f32 %v426, %v427
    %v429 = vrot.slane %v428, 2
    %v430 = vadd.f32 %v428, %v429
    %v431 = vrot.slane %v430, 1
    %v432 = vadd.f32 %v430, %v431
    %v433 = vsub.f32 %v262, %v260
    %v434 = vsub.f32 %v263, %v261
    %v435 = vadd.f32 %v433, %v434
    %v436 = vrot.slane %v435, 4
    %v437 = vadd.f32 %v435, %v436
    %v438 = vrot.slane %v437, 2
    %v439 = vadd.f32 %v437, %v438
    %v440 = vrot.slane %v439, 1
    %v441 = vadd.f32 %v439, %v440
    %v442 = vmul.f32 %v419, %v419
    %v443 = vmul.f32 %v432, %v432
    %v444 = vadd.f32 %v442, %v443
    %v445 = vmul.f32 %v444, %v170
    %v446 = vadd.f32 %v445, 0.0
    %v447 = vmul.f32 %v441, %v441
    %v448 = vadd.f32 %v278, %v447
    %v449 = vmul.f32 %v448, %v173
    %v450 = vadd.f32 %v449, 0.0
    %v451 = vmul.f32 %v28, %v44
    %v452 = vmul.f32 %v29, %v45
    %v453 = vmul.f32 %v36, %v52
    %v454 = vmul.f32 %v37, %v53
    %v455 = vadd.f32 %v451, %v453
    %v456 = vadd.f32 %v452, %v454
    %v457 = vadd.f32 %v455, %v456
    %v458 = vrot.slane %v457, 4
    %v459 = vadd.f32 %v457, %v458
    %v460 = vrot.slane %v459, 2
    %v461 = vadd.f32 %v459, %v460
    %v462 = vrot.slane %v461, 1
    %v463 = vadd.f32 %v461, %v462
    %v464 = vmul.f32 %v28, %v52
    %v465 = vmul.f32 %v29, %v53
    %v466 = vmul.f32 %v36, %v44
    %v467 = vmul.f32 %v37, %v45
    %v468 = vsub.f32 %v464, %v466
    %v469 = vsub.f32 %v465, %v467
    %v470 = vadd.f32 %v468, %v469
    %v471 = vrot.slane %v470, 4
    %v472 = vadd.f32 %v470, %v471
    %v473 = vrot.slane %v472, 2
    %v474 = vadd.f32 %v472, %v473
    %v475 = vrot.slane %v474, 1
    %v476 = vadd.f32 %v474, %v475
    %v477 = vmul.f32 %v44, %v52
    %v478 = vmul.f32 %v45, %v53
    %v479 = vsub.f32 %v477, %v477
    %v480 = vsub.f32 %v478, %v478
    %v481 = vadd.f32 %v479, %v480
    %v482 = vrot.slane %v481, 4
    %v483 = vadd.f32 %v481, %v482
    %v484 = vrot.slane %v483, 2
    %v485 = vadd.f32 %v483, %v484
    %v486 = vrot.slane %v485, 1
    %v487 = vadd.f32 %v485, %v486
    %v488 = vmul.f32 %v463, %v463
    %v489 = vmul.f32 %v476, %v476
    %v490 = vadd.f32 %v488, %v489
    %v491 = vmul.f32 %v490, %v170
    %v492 = vadd.f32 %v491, 1.0
    %v493 = vmul.f32 %v138, %v138
    %v494 = vmul.f32 %v487, %v487
    %v495 = vadd.f32 %v493, %v494
    %v496 = vmul.f32 %v495, %v173
    %v497 = vadd.f32 %v496, 1.0
    %v498 = vmul.f32 %v28, %v46
    %v499 = vmul.f32 %v29, %v47
    %v500 = vmul.f32 %v36, %v54
    %v501 = vmul.f32 %v37, %v55
    %v502 = vadd.f32 %v498, %v500
    %v503 = vadd.f32 %v499, %v501
    %v504 = vadd.f32 %v502, %v503
    %v505 = vrot.slane %v504, 4
    %v506 = vadd.f32 %v504, %v505
    %v507 = vrot.slane %v506, 2
    %v508 = vadd.f32 %v506, %v507
    %v509 = vrot.slane %v508, 1
    %v510 = vadd.f32 %v508, %v509
    %v511 = vmul.f32 %v28, %v54
    %v512 = vmul.f32 %v29, %v55
    %v513 = vmul.f32 %v36, %v46
    %v514 = vmul.f32 %v37, %v47
    %v515 = vsub.f32 %v511, %v513
    %v516 = vsub.f32 %v512, %v514
    %v517 = vadd.f32 %v515, %v516
    %v518 = vrot.slane %v517, 4
    %v519 = vadd.f32 %v517, %v518
    %v520 = vrot.slane %v519, 2
    %v521 = vadd.f32 %v519, %v520
    %v522 = vrot.slane %v521, 1
    %v523 = vadd.f32 %v521, %v522
    %v524 = vmul.f32 %v44, %v46
    %v525 = vmul.f32 %v45, %v47
    %v526 = vmul.f32 %v52, %v54
    %v527 = vmul.f32 %v53, %v55
    %v528 = vadd.f32 %v524, %v526
    %v529 = vadd.f32 %v525, %v527
    %v530 = vadd.f32 %v528, %v529
    %v531 = vrot.slane %v530, 4
    %v532 = vadd.f32 %v530, %v531
    %v533 = vrot.slane %v532, 2
    %v534 = vadd.f32 %v532, %v533
    %v535 = vrot.slane %v534, 1
    %v536 = vadd.f32 %v534, %v535
    %v537 = vmul.f32 %v44, %v54
    %v538 = vmul.f32 %v45, %v55
    %v539 = vmul.f32 %v52, %v46
    %v540 = vmul.f32 %v53, %v47
    %v541 = vsub.f32 %v537, %v539
    %v542 = vsub.f32 %v538, %v540
    %v543 = vadd.f32 %v541, %v542
    %v544 = vrot.slane %v543, 4
    %v545 = vadd.f32 %v543, %v544
    %v546 = vrot.slane %v545, 2
    %v547 = vadd.f32 %v545, %v546
    %v548 = vrot.slane %v547, 1
    %v549 = vadd.f32 %v547, %v548
    %v550 = vmul.f32 %v510, %v510
    %v551 = vmul.f32 %v523, %v523
    %v552 = vadd.f32 %v550, %v551
    %v553 = vmul.f32 %v552, %v170
    %v554 = vadd.f32 %v553, 0.0
    %v555 = vmul.f32 %v536, %v536
    %v556 = vmul.f32 %v549, %v549
    %v557 = vadd.f32 %v555, %v556
    %v558 = vmul.f32 %v557, %v173
    %v559 = vadd.f32 %v558, 0.0
    %v560 = vmul.f32 %v28, %v48
    %v561 = vmul.f32 %v29, %v49
    %v562 = vmul.f32 %v36, %v56
    %v563 = vmul.f32 %v37, %v57
    %v564 = vadd.f32 %v560, %v562
    %v565 = vadd.f32 %v561, %v563
    %v566 = vadd.f32 %v564, %v565
    %v567 = vrot.slane %v566, 4
    %v568 = vadd.f32 %v566, %v567
    %v569 = vrot.slane %v568, 2
    %v570 = vadd.f32 %v568, %v569
    %v571 = vrot.slane %v570, 1
    %v572 = vadd.f32 %v570, %v571
    %v573 = vmul.f32 %v28, %v56
    %v574 = vmul.f32 %v29, %v57
    %v575 = vmul.f32 %v36, %v48
    %v576 = vmul.f32 %v37, %v49
    %v577 = vsub.f32 %v573, %v575
    %v578 = vsub.f32 %v574, %v576
    %v579 = vadd.f32 %v577, %v578
    %v580 = vrot.slane %v579, 4
    %v581 = vadd.f32 %v579, %v580
    %v582 = vrot.slane %v581, 2
    %v583 = vadd.f32 %v581, %v582
    %v584 = vrot.slane %v583, 1
    %v585 = vadd.f32 %v583, %v584
    %v586 = vmul.f32 %v44, %v48
    %v587 = vmul.f32 %v45, %v49
    %v588 = vmul.f32 %v52, %v56
    %v589 = vmul.f32 %v53, %v57
    %v590 = vadd.f32 %v586, %v588
    %v591 = vadd.f32 %v587, %v589
    %v592 = vadd.f32 %v590, %v591
    %v593 = vrot.slane %v592, 4
    %v594 = vadd.f32 %v592, %v593
    %v595 = vrot.slane %v594, 2
    %v596 = vadd.f32 %v594, %v595
    %v597 = vrot.slane %v596, 1
    %v598 = vadd.f32 %v596, %v597
    %v599 = vmul.f32 %v44, %v56
    %v600 = vmul.f32 %v45, %v57
    %v601 = vmul.f32 %v52, %v48
    %v602 = vmul.f32 %v53, %v49
    %v603 = vsub.f32 %v599, %v601
    %v604 = vsub.f32 %v600, %v602
    %v605 = vadd.f32 %v603, %v604
    %v606 = vrot.slane %v605, 4
    %v607 = vadd.f32 %v605, %v606
    %v608 = vrot.slane %v607, 2
    %v609 = vadd.f32 %v607, %v608
    %v610 = vrot.slane %v609, 1
    %v611 = vadd.f32 %v609, %v610
    %v612 = vmul.f32 %v572, %v572
    %v613 = vmul.f32 %v585, %v585
    %v614 = vadd.f32 %v612, %v613
    %v615 = vmul.f32 %v614, %v170
    %v616 = vadd.f32 %v615, 0.0
    %v617 = vmul.f32 %v598, %v598
    %v618 = vmul.f32 %v611, %v611
    %v619 = vadd.f32 %v617, %v618
    %v620 = vmul.f32 %v619, %v173
    %v621 = vadd.f32 %v620, 0.0
    %v622 = vmul.f32 %v30, %v42
    %v623 = vmul.f32 %v31, %v43
    %v624 = vmul.f32 %v38, %v50
    %v625 = vmul.f32 %v39, %v51
    %v626 = vadd.f32 %v622, %v624
    %v627 = vadd.f32 %v623, %v625
    %v628 = vadd.f32 %v626, %v627
    %v629 = vrot.slane %v628, 4
    %v630 = vadd.f32 %v628, %v629
    %v631 = vrot.slane %v630, 2
    %v632 = vadd.f32 %v630, %v631
    %v633 = vrot.slane %v632, 1
    %v634 = vadd.f32 %v632, %v633
    %v635 = vmul.f32 %v30, %v50
    %v636 = vmul.f32 %v31, %v51
    %v637 = vmul.f32 %v38, %v42
    %v638 = vmul.f32 %v39, %v43
    %v639 = vsub.f32 %v635, %v637
    %v640 = vsub.f32 %v636, %v638
    %v641 = vadd.f32 %v639, %v640
    %v642 = vrot.slane %v641, 4
    %v643 = vadd.f32 %v641, %v642
    %v644 = vrot.slane %v643, 2
    %v645 = vadd.f32 %v643, %v644
    %v646 = vrot.slane %v645, 1
    %v647 = vadd.f32 %v645, %v646
    %v648 = vsub.f32 %v324, %v322
    %v649 = vsub.f32 %v325, %v323
    %v650 = vadd.f32 %v648, %v649
    %v651 = vrot.slane %v650, 4
    %v652 = vadd.f32 %v650, %v651
    %v653 = vrot.slane %v652, 2
    %v654 = vadd.f32 %v652, %v653
    %v655 = vrot.slane %v654, 1
    %v656 = vadd.f32 %v654, %v655
    %v657 = vmul.f32 %v634, %v634
    %v658 = vmul.f32 %v647, %v647
    %v659 = vadd.f32 %v657, %v658
    %v660 = vmul.f32 %v659, %v170
    %v661 = vadd.f32 %v660, 0.0
    %v662 = vmul.f32 %v656, %v656
    %v663 = vadd.f32 %v340, %v662
    %v664 = vmul.f32 %v663, %v173
    %v665 = vadd.f32 %v664, 0.0
    %v666 = vmul.f32 %v30, %v44
    %v667 = vmul.f32 %v31, %v45
    %v668 = vmul.f32 %v38, %v52
    %v669 = vmul.f32 %v39, %v53
    %v670 = vadd.f32 %v666, %v668
    %v671 = vadd.f32 %v667, %v669
    %v672 = vadd.f32 %v670, %v671
    %v673 = vrot.slane %v672, 4
    %v674 = vadd.f32 %v672, %v673
    %v675 = vrot.slane %v674, 2
    %v676 = vadd.f32 %v674, %v675
    %v677 = vrot.slane %v676, 1
    %v678 = vadd.f32 %v676, %v677
    %v679 = vmul.f32 %v30, %v52
    %v680 = vmul.f32 %v31, %v53
    %v681 = vmul.f32 %v38, %v44
    %v682 = vmul.f32 %v39, %v45
    %v683 = vsub.f32 %v679, %v681
    %v684 = vsub.f32 %v680, %v682
    %v685 = vadd.f32 %v683, %v684
    %v686 = vrot.slane %v685, 4
    %v687 = vadd.f32 %v685, %v686
    %v688 = vrot.slane %v687, 2
    %v689 = vadd.f32 %v687, %v688
    %v690 = vrot.slane %v689, 1
    %v691 = vadd.f32 %v689, %v690
    %v692 = vsub.f32 %v539, %v537
    %v693 = vsub.f32 %v540, %v538
    %v694 = vadd.f32 %v692, %v693
    %v695 = vrot.slane %v694, 4
    %v696 = vadd.f32 %v694, %v695
    %v697 = vrot.slane %v696, 2
    %v698 = vadd.f32 %v696, %v697
    %v699 = vrot.slane %v698, 1
    %v700 = vadd.f32 %v698, %v699
    %v701 = vmul.f32 %v678, %v678
    %v702 = vmul.f32 %v691, %v691
    %v703 = vadd.f32 %v701, %v702
    %v704 = vmul.f32 %v703, %v170
    %v705 = vadd.f32 %v704, 0.0
    %v706 = vmul.f32 %v700, %v700
    %v707 = vadd.f32 %v555, %v706
    %v708 = vmul.f32 %v707, %v173
    %v709 = vadd.f32 %v708, 0.0
    %v710 = vmul.f32 %v30, %v46
    %v711 = vmul.f32 %v31, %v47
    %v712 = vmul.f32 %v38, %v54
    %v713 = vmul.f32 %v39, %v55
    %v714 = vadd.f32 %v710, %v712
    %v715 = vadd.f32 %v711, %v713
    %v716 = vadd.f32 %v714, %v715
    %v717 = vrot.slane %v716, 4
    %v718 = vadd.f32 %v716, %v717
    %v719 = vrot.slane %v718, 2
    %v720 = vadd.f32 %v718, %v719
    %v721 = vrot.slane %v720, 1
    %v722 = vadd.f32 %v720, %v721
    %v723 = vmul.f32 %v30, %v54
    %v724 = vmul.f32 %v31, %v55
    %v725 = vmul.f32 %v38, %v46
    %v726 = vmul.f32 %v39, %v47
    %v727 = vsub.f32 %v723, %v725
    %v728 = vsub.f32 %v724, %v726
    %v729 = vadd.f32 %v727, %v728
    %v730 = vrot.slane %v729, 4
    %v731 = vadd.f32 %v729, %v730
    %v732 = vrot.slane %v731, 2
    %v733 = vadd.f32 %v731, %v732
    %v734 = vrot.slane %v733, 1
    %v735 = vadd.f32 %v733, %v734
    %v736 = vmul.f32 %v46, %v54
    %v737 = vmul.f32 %v47, %v55
    %v738 = vsub.f32 %v736, %v736
    %v739 = vsub.f32 %v737, %v737
    %v740 = vadd.f32 %v738, %v739
    %v741 = vrot.slane %v740, 4
    %v742 = vadd.f32 %v740, %v741
    %v743 = vrot.slane %v742, 2
    %v744 = vadd.f32 %v742, %v743
    %v745 = vrot.slane %v744, 1
    %v746 = vadd.f32 %v744, %v745
    %v747 = vmul.f32 %v722, %v722
    %v748 = vmul.f32 %v735, %v735
    %v749 = vadd.f32 %v747, %v748
    %v750 = vmul.f32 %v749, %v170
    %v751 = vadd.f32 %v750, 1.0
    %v752 = vmul.f32 %v152, %v152
    %v753 = vmul.f32 %v746, %v746
    %v754 = vadd.f32 %v752, %v753
    %v755 = vmul.f32 %v754, %v173
    %v756 = vadd.f32 %v755, 1.0
    %v757 = vmul.f32 %v30, %v48
    %v758 = vmul.f32 %v31, %v49
    %v759 = vmul.f32 %v38, %v56
    %v760 = vmul.f32 %v39, %v57
    %v761 = vadd.f32 %v757, %v759
    %v762 = vadd.f32 %v758, %v760
    %v763 = vadd.f32 %v761, %v762
    %v764 = vrot.slane %v763, 4
    %v765 = vadd.f32 %v763, %v764
    %v766 = vrot.slane %v765, 2
    %v767 = vadd.f32 %v765, %v766
    %v768 = vrot.slane %v767, 1
    %v769 = vadd.f32 %v767, %v768
    %v770 = vmul.f32 %v30, %v56
    %v771 = vmul.f32 %v31, %v57
    %v772 = vmul.f32 %v38, %v48
    %v773 = vmul.f32 %v39, %v49
    %v774 = vsub.f32 %v770, %v772
    %v775 = vsub.f32 %v771, %v773
    %v776 = vadd.f32 %v774, %v775
    %v777 = vrot.slane %v776, 4
    %v778 = vadd.f32 %v776, %v777
    %v779 = vrot.slane %v778, 2
    %v780 = vadd.f32 %v778, %v779
    %v781 = vrot.slane %v780, 1
    %v782 = vadd.f32 %v780, %v781
    %v783 = vmul.f32 %v46, %v48
    %v784 = vmul.f32 %v47, %v49
    %v785 = vmul.f32 %v54, %v56
    %v786 = vmul.f32 %v55, %v57
    %v787 = vadd.f32 %v783, %v785
    %v788 = vadd.f32 %v784, %v786
    %v789 = vadd.f32 %v787, %v788
    %v790 = vrot.slane %v789, 4
    %v791 = vadd.f32 %v789, %v790
    %v792 = vrot.slane %v791, 2
    %v793 = vadd.f32 %v791, %v792
    %v794 = vrot.slane %v793, 1
    %v795 = vadd.f32 %v793, %v794
    %v796 = vmul.f32 %v46, %v56
    %v797 = vmul.f32 %v47, %v57
    %v798 = vmul.f32 %v54, %v48
    %v799 = vmul.f32 %v55, %v49
    %v800 = vsub.f32 %v796, %v798
    %v801 = vsub.f32 %v797, %v799
    %v802 = vadd.f32 %v800, %v801
    %v803 = vrot.slane %v802, 4
    %v804 = vadd.f32 %v802, %v803
    %v805 = vrot.slane %v804, 2
    %v806 = vadd.f32 %v804, %v805
    %v807 = vrot.slane %v806, 1
    %v808 = vadd.f32 %v806, %v807
    %v809 = vmul.f32 %v769, %v769
    %v810 = vmul.f32 %v782, %v782
    %v811 = vadd.f32 %v809, %v810
    %v812 = vmul.f32 %v811, %v170
    %v813 = vadd.f32 %v812, 0.0
    %v814 = vmul.f32 %v795, %v795
    %v815 = vmul.f32 %v808, %v808
    %v816 = vadd.f32 %v814, %v815
    %v817 = vmul.f32 %v816, %v173
    %v818 = vadd.f32 %v817, 0.0
    %v819 = vmul.f32 %v32, %v42
    %v820 = vmul.f32 %v33, %v43
    %v821 = vmul.f32 %v40, %v50
    %v822 = vmul.f32 %v41, %v51
    %v823 = vadd.f32 %v819, %v821
    %v824 = vadd.f32 %v820, %v822
    %v825 = vadd.f32 %v823, %v824
    %v826 = vrot.slane %v825, 4
    %v827 = vadd.f32 %v825, %v826
    %v828 = vrot.slane %v827, 2
    %v829 = vadd.f32 %v827, %v828
    %v830 = vrot.slane %v829, 1
    %v831 = vadd.f32 %v829, %v830
    %v832 = vmul.f32 %v32, %v50
    %v833 = vmul.f32 %v33, %v51
    %v834 = vmul.f32 %v40, %v42
    %v835 = vmul.f32 %v41, %v43
    %v836 = vsub.f32 %v832, %v834
    %v837 = vsub.f32 %v833, %v835
    %v838 = vadd.f32 %v836, %v837
    %v839 = vrot.slane %v838, 4
    %v840 = vadd.f32 %v838, %v839
    %v841 = vrot.slane %v840, 2
    %v842 = vadd.f32 %v840, %v841
    %v843 = vrot.slane %v842, 1
    %v844 = vadd.f32 %v842, %v843
    %v845 = vsub.f32 %v386, %v384
    %v846 = vsub.f32 %v387, %v385
    %v847 = vadd.f32 %v845, %v846
    %v848 = vrot.slane %v847, 4
    %v849 = vadd.f32 %v847, %v848
    %v850 = vrot.slane %v849, 2
    %v851 = vadd.f32 %v849, %v850
    %v852 = vrot.slane %v851, 1
    %v853 = vadd.f32 %v851, %v852
    %v854 = vmul.f32 %v831, %v831
    %v855 = vmul.f32 %v844, %v844
    %v856 = vadd.f32 %v854, %v855
    %v857 = vmul.f32 %v856, %v170
    %v858 = vadd.f32 %v857, 0.0
    %v859 = vmul.f32 %v853, %v853
    %v860 = vadd.f32 %v402, %v859
    %v861 = vmul.f32 %v860, %v173
    %v862 = vadd.f32 %v861, 0.0
    %v863 = vmul.f32 %v32, %v44
    %v864 = vmul.f32 %v33, %v45
    %v865 = vmul.f32 %v40, %v52
    %v866 = vmul.f32 %v41, %v53
    %v867 = vadd.f32 %v863, %v865
    %v868 = vadd.f32 %v864, %v866
    %v869 = vadd.f32 %v867, %v868
    %v870 = vrot.slane %v869, 4
    %v871 = vadd.f32 %v869, %v870
    %v872 = vrot.slane %v871, 2
    %v873 = vadd.f32 %v871, %v872
    %v874 = vrot.slane %v873, 1
    %v875 = vadd.f32 %v873, %v874
    %v876 = vmul.f32 %v32, %v52
    %v877 = vmul.f32 %v33, %v53
    %v878 = vmul.f32 %v40, %v44
    %v879 = vmul.f32 %v41, %v45
    %v880 = vsub.f32 %v876, %v878
    %v881 = vsub.f32 %v877, %v879
    %v882 = vadd.f32 %v880, %v881
    %v883 = vrot.slane %v882, 4
    %v884 = vadd.f32 %v882, %v883
    %v885 = vrot.slane %v884, 2
    %v886 = vadd.f32 %v884, %v885
    %v887 = vrot.slane %v886, 1
    %v888 = vadd.f32 %v886, %v887
    %v889 = vsub.f32 %v601, %v599
    %v890 = vsub.f32 %v602, %v600
    %v891 = vadd.f32 %v889, %v890
    %v892 = vrot.slane %v891, 4
    %v893 = vadd.f32 %v891, %v892
    %v894 = vrot.slane %v893, 2
    %v895 = vadd.f32 %v893, %v894
    %v896 = vrot.slane %v895, 1
    %v897 = vadd.f32 %v895, %v896
    %v898 = vmul.f32 %v875, %v875
    %v899 = vmul.f32 %v888, %v888
    %v900 = vadd.f32 %v898, %v899
    %v901 = vmul.f32 %v900, %v170
    %v902 = vadd.f32 %v901, 0.0
    %v903 = vmul.f32 %v897, %v897
    %v904 = vadd.f32 %v617, %v903
    %v905 = vmul.f32 %v904, %v173
    %v906 = vadd.f32 %v905, 0.0
    %v907 = vmul.f32 %v32, %v46
    %v908 = vmul.f32 %v33, %v47
    %v909 = vmul.f32 %v40, %v54
    %v910 = vmul.f32 %v41, %v55
    %v911 = vadd.f32 %v907, %v909
    %v912 = vadd.f32 %v908, %v910
    %v913 = vadd.f32 %v911, %v912
    %v914 = vrot.slane %v913, 4
    %v915 = vadd.f32 %v913, %v914
    %v916 = vrot.slane %v915, 2
    %v917 = vadd.f32 %v915, %v916
    %v918 = vrot.slane %v917, 1
    %v919 = vadd.f32 %v917, %v918
    %v920 = vmul.f32 %v32, %v54
    %v921 = vmul.f32 %v33, %v55
    %v922 = vmul.f32 %v40, %v46
    %v923 = vmul.f32 %v41, %v47
    %v924 = vsub.f32 %v920, %v922
    %v925 = vsub.f32 %v921, %v923
    %v926 = vadd.f32 %v924, %v925
    %v927 = vrot.slane %v926, 4
    %v928 = vadd.f32 %v926, %v927
    %v929 = vrot.slane %v928, 2
    %v930 = vadd.f32 %v928, %v929
    %v931 = vrot.slane %v930, 1
    %v932 = vadd.f32 %v930, %v931
    %v933 = vsub.f32 %v798, %v796
    %v934 = vsub.f32 %v799, %v797
    %v935 = vadd.f32 %v933, %v934
    %v936 = vrot.slane %v935, 4
    %v937 = vadd.f32 %v935, %v936
    %v938 = vrot.slane %v937, 2
    %v939 = vadd.f32 %v937, %v938
    %v940 = vrot.slane %v939, 1
    %v941 = vadd.f32 %v939, %v940
    %v942 = vmul.f32 %v919, %v919
    %v943 = vmul.f32 %v932, %v932
    %v944 = vadd.f32 %v942, %v943
    %v945 = vmul.f32 %v944, %v170
    %v946 = vadd.f32 %v945, 0.0
    %v947 = vmul.f32 %v941, %v941
    %v948 = vadd.f32 %v814, %v947
    %v949 = vmul.f32 %v948, %v173
    %v950 = vadd.f32 %v949, 0.0
    %v951 = vmul.f32 %v32, %v48
    %v952 = vmul.f32 %v33, %v49
    %v953 = vmul.f32 %v40, %v56
    %v954 = vmul.f32 %v41, %v57
    %v955 = vadd.f32 %v951, %v953
    %v956 = vadd.f32 %v952, %v954
    %v957 = vadd.f32 %v955, %v956
    %v958 = vrot.slane %v957, 4
    %v959 = vadd.f32 %v957, %v958
    %v960 = vrot.slane %v959, 2
    %v961 = vadd.f32 %v959, %v960
    %v962 = vrot.slane %v961, 1
    %v963 = vadd.f32 %v961, %v962
    %v964 = vmul.f32 %v32, %v56
    %v965 = vmul.f32 %v33, %v57
    %v966 = vmul.f32 %v40, %v48
    %v967 = vmul.f32 %v41, %v49
    %v968 = vsub.f32 %v964, %v966
    %v969 = vsub.f32 %v965, %v967
    %v970 = vadd.f32 %v968, %v969
    %v971 = vrot.slane %v970, 4
    %v972 = vadd.f32 %v970, %v971
    %v973 = vrot.slane %v972, 2
    %v974 = vadd.f32 %v972, %v973
    %v975 = vrot.slane %v974, 1
    %v976 = vadd.f32 %v974, %v975
    %v977 = vmul.f32 %v48, %v56
    %v978 = vmul.f32 %v49, %v57
    %v979 = vsub.f32 %v977, %v977
    %v980 = vsub.f32 %v978, %v978
    %v981 = vadd.f32 %v979, %v980
    %v982 = vrot.slane %v981, 4
    %v983 = vadd.f32 %v981, %v982
    %v984 = vrot.slane %v983, 2
    %v985 = vadd.f32 %v983, %v984
    %v986 = vrot.slane %v985, 1
    %v987 = vadd.f32 %v985, %v986
    %v988 = vmul.f32 %v963, %v963
    %v989 = vmul.f32 %v976, %v976
    %v990 = vadd.f32 %v988, %v989
    %v991 = vmul.f32 %v990, %v170
    %v992 = vadd.f32 %v991, 1.0
    %v993 = vmul.f32 %v166, %v166
    %v994 = vmul.f32 %v987, %v987
    %v995 = vadd.f32 %v993, %v994
    %v996 = vmul.f32 %v995, %v173
    %v997 = vadd.f32 %v996, 1.0
    %v998 = vmul.f32 %v751, %v992
    %v999 = vmul.f32 %v813, %v946
    %v1000 = vmul.f32 %v999, -1.0
    %v1001 = vadd.f32 %v998, %v1000
    %v1002 = vmul.f32 %v492, %v1001
    %v1003 = vmul.f32 %v705, %v992
    %v1004 = vmul.f32 %v813, %v902
    %v1005 = vmul.f32 %v1004, -1.0
    %v1006 = vadd.f32 %v1003, %v1005
    %v1007 = vmul.f32 %v554, %v1006
    %v1008 = vmul.f32 %v1007, -1.0
    %v1009 = vadd.f32 %v1002, %v1008
    %v1010 = vmul.f32 %v705, %v946
    %v1011 = vmul.f32 %v751, %v902
    %v1012 = vmul.f32 %v1011, -1.0
    %v1013 = vadd.f32 %v1010, %v1012
    %v1014 = vmul.f32 %v616, %v1013
    %v1015 = vadd.f32 %v1009, %v1014
    %v1016 = vmul.f32 %v215, %v1015
    %v1017 = vmul.f32 %v446, %v1001
    %v1018 = vmul.f32 %v661, %v992
    %v1019 = vmul.f32 %v813, %v858
    %v1020 = vmul.f32 %v1019, -1.0
    %v1021 = vadd.f32 %v1018, %v1020
    %v1022 = vmul.f32 %v554, %v1021
    %v1023 = vmul.f32 %v1022, -1.0
    %v1024 = vadd.f32 %v1017, %v1023
    %v1025 = vmul.f32 %v661, %v946
    %v1026 = vmul.f32 %v751, %v858
    %v1027 = vmul.f32 %v1026, -1.0
    %v1028 = vadd.f32 %v1025, %v1027
    %v1029 = vmul.f32 %v616, %v1028
    %v1030 = vadd.f32 %v1024, %v1029
    %v1031 = vmul.f32 %v277, %v1030
    %v1032 = vmul.f32 %v1031, -1.0
    %v1033 = vadd.f32 %v1016, %v1032
    %v1034 = vmul.f32 %v446, %v1006
    %v1035 = vmul.f32 %v492, %v1021
    %v1036 = vmul.f32 %v1035, -1.0
    %v1037 = vadd.f32 %v1034, %v1036
    %v1038 = vmul.f32 %v661, %v902
    %v1039 = vmul.f32 %v705, %v858
    %v1040 = vmul.f32 %v1039, -1.0
    %v1041 = vadd.f32 %v1038, %v1040
    %v1042 = vmul.f32 %v616, %v1041
    %v1043 = vadd.f32 %v1037, %v1042
    %v1044 = vmul.f32 %v339, %v1043
    %v1045 = vadd.f32 %v1033, %v1044
    %v1046 = vmul.f32 %v446, %v1013
    %v1047 = vmul.f32 %v492, %v1028
    %v1048 = vmul.f32 %v1047, -1.0
    %v1049 = vadd.f32 %v1046, %v1048
    %v1050 = vmul.f32 %v554, %v1041
    %v1051 = vadd.f32 %v1049, %v1050
    %v1052 = vmul.f32 %v401, %v1051
    %v1053 = vmul.f32 %v1052, -1.0
    %v1054 = vadd.f32 %v1045, %v1053
    %v1055 = vmul.f32 %v756, %v997
    %v1056 = vmul.f32 %v818, %v950
    %v1057 = vmul.f32 %v1056, -1.0
    %v1058 = vadd.f32 %v1055, %v1057
    %v1059 = vmul.f32 %v497, %v1058
    %v1060 = vmul.f32 %v709, %v997
    %v1061 = vmul.f32 %v818, %v906
    %v1062 = vmul.f32 %v1061, -1.0
    %v1063 = vadd.f32 %v1060, %v1062
    %v1064 = vmul.f32 %v559, %v1063
    %v1065 = vmul.f32 %v1064, -1.0
    %v1066 = vadd.f32 %v1059, %v1065
    %v1067 = vmul.f32 %v709, %v950
    %v1068 = vmul.f32 %v756, %v906
    %v1069 = vmul.f32 %v1068, -1.0
    %v1070 = vadd.f32 %v1067, %v1069
    %v1071 = vmul.f32 %v621, %v1070
    %v1072 = vadd.f32 %v1066, %v1071
    %v1073 = vmul.f32 %v220, %v1072
    %v1074 = vmul.f32 %v450, %v1058
    %v1075 = vmul.f32 %v665, %v997
    %v1076 = vmul.f32 %v818, %v862
    %v1077 = vmul.f32 %v1076, -1.0
    %v1078 = vadd.f32 %v1075, %v1077
    %v1079 = vmul.f32 %v559, %v1078
    %v1080 = vmul.f32 %v1079, -1.0
    %v1081 = vadd.f32 %v1074, %v1080
    %v1082 = vmul.f32 %v665, %v950
    %v1083 = vmul.f32 %v756, %v862
    %v1084 = vmul.f32 %v1083, -1.0
    %v1085 = vadd.f32 %v1082, %v1084
    %v1086 = vmul.f32 %v621, %v1085
    %v1087 = vadd.f32 %v1081, %v1086
    %v1088 = vmul.f32 %v282, %v1087
    %v1089 = vmul.f32 %v1088, -1.0
    %v1090 = vadd.f32 %v1073, %v1089
    %v1091 = vmul.f32 %v450, %v1063
    %v1092 = vmul.f32 %v497, %v1078
    %v1093 = vmul.f32 %v1092, -1.0
    %v1094 = vadd.f32 %v1091, %v1093
    %v1095 = vmul.f32 %v665, %v906
    %v1096 = vmul.f32 %v709, %v862
    %v1097 = vmul.f32 %v1096, -1.0
    %v1098 = vadd.f32 %v1095, %v1097
    %v1099 = vmul.f32 %v621, %v1098
    %v1100 = vadd.f32 %v1094, %v1099
    %v1101 = vmul.f32 %v344, %v1100
    %v1102 = vadd.f32 %v1090, %v1101
    %v1103 = vmul.f32 %v450, %v1070
    %v1104 = vmul.f32 %v497, %v1085
    %v1105 = vmul.f32 %v1104, -1.0
    %v1106 = vadd.f32 %v1103, %v1105
    %v1107 = vmul.f32 %v559, %v1098
    %v1108 = vadd.f32 %v1106, %v1107
    %v1109 = vmul.f32 %v406, %v1108
    %v1110 = vmul.f32 %v1109, -1.0
    %v1111 = vadd.f32 %v1102, %v1110
    %s1112 = smul.u32 0, 128
    %v1113 = vlaneseq
    %v1114 = vand.u32 %v1113, 127
    %v1115 = vstv %s1112
    %v1116 = vadd.s32 %v1115, %v1114
    %vm1117 = vcmp.lt.s32.totalorder %v1116, 2
    %v1118 = vand.u32 2147483647, %v1054
    %v1119 = vlog2.pop %v1118
    %v1120 = vmul.f32 %v1119, 0.6931472
    %v1121 = vrcp.pop 0.6931472
    %v1122 = vmul.f32 %v1120, %v1121
    %v1123 = vsub.f32 0.0, %v1122
    %v1124 = vsel %vm1117, %v1123, 0.0
    %v1125 = vand.u32 2147483647, %v1111
    %v1126 = vlog2.pop %v1125
    %v1127 = vmul.f32 %v1126, 0.6931472
    %v1128 = vmul.f32 %v1127, %v1121
    %v1129 = vsub.f32 0.0, %v1128
    %v1130 = vsel %vm1117, %v1129, 0.0
    %vm1131 = vcmask 1040384
    %v1132 = vsel %vm1131, %v1124, 0.0
    %1133 = vadd.xlane.f32.xlu0 %v1132
    %v1134 = vpop.xlane.xlu0 %1133
    %v1135 = vrot.slane %v1134, 4
    %v1136 = vadd.f32 %v1134, %v1135
    %v1137 = vrot.slane %v1136, 2
    %v1138 = vadd.f32 %v1136, %v1137
    %v1139 = vrot.slane %v1138, 1
    %v1140 = vadd.f32 %v1138, %v1139
    %s1141 = vtos %v1140
    %v1142 = vsel %vm1131, %v1130, 0.0
    %1143 = vadd.xlane.f32.xlu0 %v1142
    %v1144 = vpop.xlane.xlu0 %1143
    %v1145 = vrot.slane %v1144, 4
    %v1146 = vadd.f32 %v1144, %v1145
    %v1147 = vrot.slane %v1146, 2
    %v1148 = vadd.f32 %v1146, %v1147
    %v1149 = vrot.slane %v1148, 1
    %v1150 = vadd.f32 %v1148, %v1149
    %s1151 = vtos %v1150
    %v1152 = vstv %s1141
    %v1153 = vadd.f32 %v1152, 0.0
    %1154 = vst [vmem:[#allocation5] sm:$0xff] %v1153
    %v1155 = vstv %s1151
    %v1156 = vadd.f32 %v1155, 0.0
    %1157 = vst [vmem:[#allocation6] sm:$0xff] %v1156
    // Predicated region
    $region10: #{tpu_custom_call.1} parent=1 // pred_check
      _
    $region11: #{tpu_custom_call.1} parent=1 // pred_check_branch
      %1159 = sbr.rel (0) target = $region13
    $region12: #{tpu_custom_call.1} parent=1 // pred_region
      %s1161 = ssub.s32 128, 128
      %1162 = vsyncadd [#allocation4], %s1161
      %s1164 = sshll.u32 [#allocation5], 4
      %s1165 = int_to_ptr.vmem [resolvable:$true] %s1164
      %1167 = dma.vmem_to_hbm [thread:$0]  %s1165, 128, %s1, [#allocation4]
    $region13: #{tpu_custom_call.1} parent=1 // pred_fallthru
      _
    // Predicated region
    $region14: #{tpu_custom_call.1} parent=1 // pred_check
      _
    $region15: #{tpu_custom_call.1} parent=1 // pred_check_branch
      %1169 = sbr.rel (0) target = $region17
    $region16: #{tpu_custom_call.1} parent=1 // pred_region
      %s1171 = ssub.s32 128, 128
      %1172 = vsyncadd [#allocation7], %s1171
      %s1174 = sshll.u32 [#allocation6], 4
      %s1175 = int_to_ptr.vmem [resolvable:$true] %s1174
      %1177 = dma.vmem_to_hbm [thread:$0]  %s1175, 128, %s2, [#allocation7]
    $region17: #{tpu_custom_call.1} parent=1 // pred_fallthru
      _
    // Predicated region
    $region18: #{tpu_custom_call.1} parent=1 // pred_check
      _
    $region19: #{tpu_custom_call.1} parent=1 // pred_check_branch
      %1179 = sbr.rel (0) target = $region21
    $region20: #{tpu_custom_call.1} parent=1 // pred_region
      %1180 = dma.done [#allocation4], 128
    $region21: #{tpu_custom_call.1} parent=1 // pred_fallthru
      _
    // Predicated region
    $region22: #{tpu_custom_call.1} parent=1 // pred_check
      _
    $region23: #{tpu_custom_call.1} parent=1 // pred_check_branch
      %1182 = sbr.rel (0) target = $region25
    $region24: #{tpu_custom_call.1} parent=1 // pred_region
      %1183 = dma.done [#allocation7], 128
    $region25: #{tpu_custom_call.1} parent=1 // pred_fallthru
      _
    %1184 = vsyncpa [#allocation3], 1
    %1185 = vsyncpa [#allocation4], 1
    %1186 = vsyncpa [#allocation7], 1

</llo_original>
